<compile_context>
chip_gen: v7x
topology: tpu7x:2x2x1
jax: 0.10.0
libtpu: 0.0.40
codegen_flags: <defaults>
</compile_context>

<pallas_src>
import jax
import jax.numpy as jnp
from jax.experimental import pallas as pl
from jax.experimental.pallas import tpu as pltpu


# ----------------------------------------------------------------------------
# Kernel
# ----------------------------------------------------------------------------
def _make_kernel(H, W, Cin, Chid, Cout, Cred, Nb):
    HW = H * W

    def kernel(x_ref,                       # (Nb, Cin, HW)
               masks_ref,                   # (8, HW) f32, 8 non-center-tap masks
               w1_ref, b1_ref,              # (Chid, Cin), (Chid, 1)   [BN1 folded]
               dw_ref, b2_ref,              # (Chid, 9),  (Chid, 1)    [BN2 folded]
               sew1_ref, seb1_ref,          # (Chid, Cred), (1, Cred)
               sew2_ref, seb2_ref,          # (Chid, Cred), (Chid, 1)
               w3_ref, b3_ref,              # (Cout, Chid), (Cout, 1)  [BN3 folded]
               o_ref):                      # (Nb, Cout, HW)
        # Load shared weights / masks once for the whole block of images.
        w1 = w1_ref[...]
        b1 = b1_ref[...]
        dw = dw_ref[...]
        b2 = b2_ref[...]
        w3 = w3_ref[...]
        b3 = b3_ref[...]
        masks = masks_ref[...]                                   # (8, HW)
        inv_hw = 1.0 / HW

        for n in range(Nb):                                      # static unroll
            x = x_ref[n].astype(jnp.float32)                     # (Cin, HW)

            # ---- conv1: 1x1 expansion (+ folded BN) + ReLU6 --- MXU --------
            h1 = jnp.dot(w1, x, preferred_element_type=jnp.float32)
            h1 = jnp.clip(h1 + b1, 0.0, 6.0)                     # (Chid, HW)

            # ---- conv2: 3x3 depthwise, stride 1, pad 1 (+ BN) + ReLU6 ------
            # 9 shifted FMAs: pltpu.roll along the flattened H*W lane axis
            # (XLU slot) with hoisted, precomputed boundary masks.
            acc = dw[:, 4:5] * h1                                # center tap
            mi = 0
            for ky in range(3):
                dy = ky - 1
                for kx in range(3):
                    dx = kx - 1
                    if dy == 0 and dx == 0:
                        continue
                    k = ky * 3 + kx
                    # shifted[p] = h1[p + dy*W + dx]  (jnp.roll semantics)
                    shift = (-(dy * W + dx)) % HW
                    shifted = pltpu.roll(h1, shift, axis=1)
                    acc = acc + dw[:, k:k + 1] * (shifted * masks[mi:mi + 1, :])
                    mi += 1
            h2 = jnp.clip(acc + b2, 0.0, 6.0)                    # (Chid, HW)

            # ---- SE attention (channels stay on sublanes) ------------------
            # At Cred=4 these reductions are tiny; at production sizes move
            # both FC layers to MXU dots.
            pooled = jnp.sum(h2, axis=1, keepdims=True) * inv_hw         # (Chid,1)
            t1 = jnp.sum(sew1_ref[...] * pooled, axis=0, keepdims=True)  # (1,Cred)
            t1 = jnp.maximum(t1 + seb1_ref[...], 0.0)
            t2 = jnp.sum(sew2_ref[...] * t1, axis=1, keepdims=True)      # (Chid,1)
            gate = pl.reciprocal(1.0 + jnp.exp(-(t2 + seb2_ref[...])),
                                 approx=True)                            # sigmoid
            h2 = h2 * gate

            # ---- conv3: 1x1 projection (+ folded BN) --- MXU --------------
            h3 = jnp.dot(w3, h2, preferred_element_type=jnp.float32) + b3

            # ---- identity residual (stride == 1, in == out) ----------------
            o_ref[n] = (x + h3).astype(o_ref.dtype)

    return kernel


# ----------------------------------------------------------------------------
# Wrapper
# ----------------------------------------------------------------------------
def _boundary_masks(H, W):
    """(8, H*W) f32 masks for the 8 non-center 3x3 taps (order: ky-major)."""
    HW = H * W
    lane = jnp.arange(HW, dtype=jnp.int32)
    col = lane % W
    row = lane // W
    rows = []
    for ky in range(3):
        dy = ky - 1
        for kx in range(3):
            dx = kx - 1
            if dy == 0 and dx == 0:
                continue
            m = jnp.ones((HW,), jnp.bool_)
            if dy == -1:
                m = jnp.logical_and(m, row > 0)
            elif dy == 1:
                m = jnp.logical_and(m, row < H - 1)
            if dx == -1:
                m = jnp.logical_and(m, col > 0)
            elif dx == 1:
                m = jnp.logical_and(m, col < W - 1)
            rows.append(m)
    return jnp.stack(rows, axis=0).astype(jnp.float32)


def se_inverted_residual(x_nchw, params):
    """x_nchw: (N, Cin, H, W). Returns (N, Cout, H, W)."""
    N, Cin, H, W = x_nchw.shape
    HW = H * W
    Chid, Cred = params["se_w1"].shape
    Cout = params["w3"].shape[0]
    assert Cin == Cout, "identity-residual branch requires in_chans == out_chans"

    # Block Nb images per grid step so Nb*Cin fills the 8 sublanes (Nb=2 here).
    Nb = max(1, min(N, 8 // max(Cin, 1)))
    while N % Nb:
        Nb -= 1
    grid = (N // Nb,)

    x3 = x_nchw.reshape(N, Cin, HW)          # free reshape, no HBM transpose
    masks = _boundary_masks(H, W)

    operands = [
        x3, masks,
        params["w1"], params["b1"],
        params["dw"], params["b2"],
        params["se_w1"], params["se_b1"], params["se_w2"], params["se_b2"],
        params["w3"], params["b3"],
    ]

    def fixed_spec(arr):
        nd = arr.ndim

        def imap(n):
            return (0,) * nd

        return pl.BlockSpec(arr.shape, imap)

    in_specs = [pl.BlockSpec((Nb, Cin, HW), lambda n: (n, 0, 0))]
    in_specs += [fixed_spec(a) for a in operands[1:]]

    kernel = _make_kernel(H, W, Cin, Chid, Cout, Cred, Nb)

    out3 = pl.pallas_call(
        kernel,
        out_shape=jax.ShapeDtypeStruct((N, Cout, HW), x_nchw.dtype),
        grid=grid,
        in_specs=in_specs,
        out_specs=pl.BlockSpec((Nb, Cout, HW), lambda n: (n, 0, 0)),
        compiler_params=pltpu.CompilerParams(
            dimension_semantics=("parallel",)),
    )(*operands)

    return out3.reshape(N, Cout, H, W)


# ----------------------------------------------------------------------------
# Parameters (torch-layout "raw" params, then folded/re-laid-out for the kernel)
# ----------------------------------------------------------------------------
def init_raw_params(key, in_chans=4, out_chans=4, expand_t=4, reduction=4):
    hidden = in_chans * expand_t
    red = max(hidden // reduction, 1)
    ks = jax.random.split(key, 10)

    def nrm(k, shape, scale):
        return scale * jax.random.normal(k, shape, jnp.float32)

    def bn(k, c):
        kg, kb, km, kv = jax.random.split(k, 4)
        return dict(
            gamma=1.0 + 0.1 * jax.random.normal(kg, (c,), jnp.float32),
            beta=0.1 * jax.random.normal(kb, (c,), jnp.float32),
            mean=0.1 * jax.random.normal(km, (c,), jnp.float32),
            var=1.0 + 0.5 * jax.random.uniform(kv, (c,), jnp.float32),
        )

    return dict(
        conv1_w=nrm(ks[0], (hidden, in_chans, 1, 1), 0.4),   # Conv2d(in, hid, 1)
        bn1=bn(ks[1], hidden),
        conv2_w=nrm(ks[2], (hidden, 1, 3, 3), 0.3),          # depthwise 3x3
        bn2=bn(ks[3], hidden),
        se_fc1_w=nrm(ks[4], (red, hidden), 0.3),             # Linear(hid -> red)
        se_fc1_b=nrm(ks[5], (red,), 0.1),
        se_fc2_w=nrm(ks[6], (hidden, red), 0.3),             # Linear(red -> hid)
        se_fc2_b=nrm(ks[7], (hidden,), 0.1),
        conv3_w=nrm(ks[8], (out_chans, hidden, 1, 1), 0.3),  # Conv2d(hid, out, 1)
        bn3=bn(ks[9], out_chans),
    )


def fold_params(raw, eps=1e-5):
    """Inference-mode BN folded into conv weights; kernel-friendly layouts."""
    def bn_fold(b):
        scale = b["gamma"] * jax.lax.rsqrt(b["var"] + eps)
        bias = b["beta"] - b["mean"] * scale
        return scale, bias

    s1, b1 = bn_fold(raw["bn1"])
    s2, b2 = bn_fold(raw["bn2"])
    s3, b3 = bn_fold(raw["bn3"])
    hidden = raw["conv2_w"].shape[0]

    return dict(
        w1=raw["conv1_w"][:, :, 0, 0] * s1[:, None],          # (Chid, Cin)
        b1=b1[:, None],                                        # (Chid, 1)
        dw=raw["conv2_w"].reshape(hidden, 9) * s2[:, None],    # (Chid, 9), k=3*ky+kx
        b2=b2[:, None],                                        # (Chid, 1)
        se_w1=raw["se_fc1_w"].T,                               # (Chid, Cred)
        se_b1=raw["se_fc1_b"][None, :],                        # (1, Cred)
        se_w2=raw["se_fc2_w"],                                 # (Chid, Cred)
        se_b2=raw["se_fc2_b"][:, None],                        # (Chid, 1)
        w3=raw["conv3_w"][:, :, 0, 0] * s3[:, None],           # (Cout, Chid)
        b3=b3[:, None],                                        # (Cout, 1)
    )


# ----------------------------------------------------------------------------
# Pure-JAX reference (same folded params) for a correctness check
# ----------------------------------------------------------------------------
def se_inverted_residual_reference(x_nchw, p):
    N, Cin, H, W = x_nchw.shape
    x = x_nchw.astype(jnp.float32)
    Chid = p["w1"].shape[0]

    h1 = jnp.einsum("oc,nchw->nohw", p["w1"], x) + p["b1"].reshape(1, Chid, 1, 1)
    h1 = jnp.clip(h1, 0.0, 6.0)

    pad = jnp.pad(h1, ((0, 0), (0, 0), (1, 1), (1, 1)))
    acc = jnp.zeros_like(h1)
    for ky in range(3):
        for kx in range(3):
            acc = acc + p["dw"][:, ky * 3 + kx].reshape(1, Chid, 1, 1) * \
                pad[:, :, ky:ky + H, kx:kx + W]
    h2 = jnp.clip(acc + p["b2"].reshape(1, Chid, 1, 1), 0.0, 6.0)

    pooled = jnp.mean(h2, axis=(2, 3))                          # (N, Chid)
    z = jnp.maximum(pooled @ p["se_w1"] + p["se_b1"], 0.0)      # (N, Cred)
    g = jax.nn.sigmoid(z @ p["se_w2"].T + p["se_b2"].reshape(1, -1))
    h2 = h2 * g[:, :, None, None]

    h3 = jnp.einsum("oc,nchw->nohw", p["w3"], h2) + p["b3"].reshape(1, -1, 1, 1)
    return (x + h3).astype(x_nchw.dtype)


# ----------------------------------------------------------------------------
if __name__ == "__main__":
    key = jax.random.PRNGKey(0)
    k_x, k_p = jax.random.split(key)

    # batch=2, in=out=4 channels, 16x16 spatial, expand_t=4 (hidden=16),
    # reduction=4 (SE bottleneck=4).
    N, Cin, H, W = 2, 4, 16, 16
    x = jax.random.normal(k_x, (N, Cin, H, W), jnp.float32)
    raw = init_raw_params(k_p, in_chans=Cin, out_chans=Cin, expand_t=4, reduction=4)
    params = fold_params(raw)

    y = se_inverted_residual(x, params)
    y = jax.block_until_ready(y)

    assert y.shape == (N, Cin, H, W)
    assert bool(jnp.all(jnp.isfinite(y)))

    # Tolerance 1e-2 absorbs the approx-reciprocal (EUP) sigmoid gate; everything
    # else accumulates in f32.
    y_ref = se_inverted_residual_reference(x, params)
    assert bool(jnp.allclose(y, y_ref, atol=1e-2, rtol=1e-2)), \
        float(jnp.max(jnp.abs(y - y_ref)))

    print("KERNEL_OK")
</pallas_src>

<mosaic_0001>
module attributes {stable_mosaic.version = 11 : i64} {
  func.func @kernel(%arg0: i32, %arg1: memref<2x4x256xf32, #tpu.memory_space<vmem>>, %arg2: memref<8x256xf32, #tpu.memory_space<vmem>>, %arg3: memref<16x4xf32, #tpu.memory_space<vmem>>, %arg4: memref<16x1xf32, #tpu.memory_space<vmem>>, %arg5: memref<16x9xf32, #tpu.memory_space<vmem>>, %arg6: memref<16x1xf32, #tpu.memory_space<vmem>>, %arg7: memref<16x4xf32, #tpu.memory_space<vmem>>, %arg8: memref<1x4xf32, #tpu.memory_space<vmem>>, %arg9: memref<16x4xf32, #tpu.memory_space<vmem>>, %arg10: memref<16x1xf32, #tpu.memory_space<vmem>>, %arg11: memref<4x16xf32, #tpu.memory_space<vmem>>, %arg12: memref<4x1xf32, #tpu.memory_space<vmem>>, %arg13: memref<2x4x256xf32, #tpu.memory_space<vmem>>) attributes {dimension_semantics = [#tpu.dimension_semantics<parallel>], iteration_bounds = array<i64: 1>, scalar_prefetch = 0 : i64, scratch_operands = 0 : i64, tpu.core_type = #tpu.core_type<tc>, window_params = [{transform_indices = @transform_0, window_bounds = array<i64: 2, 4, 256>}, {pipeline_mode = #tpu.pipeline_mode<synchronous>, transform_indices = @transform_1, window_bounds = array<i64: 8, 256>}, {pipeline_mode = #tpu.pipeline_mode<synchronous>, transform_indices = @transform_2, window_bounds = array<i64: 16, 4>}, {pipeline_mode = #tpu.pipeline_mode<synchronous>, transform_indices = @transform_3, window_bounds = array<i64: 16, 1>}, {pipeline_mode = #tpu.pipeline_mode<synchronous>, transform_indices = @transform_4, window_bounds = array<i64: 16, 9>}, {pipeline_mode = #tpu.pipeline_mode<synchronous>, transform_indices = @transform_5, window_bounds = array<i64: 16, 1>}, {pipeline_mode = #tpu.pipeline_mode<synchronous>, transform_indices = @transform_6, window_bounds = array<i64: 16, 4>}, {pipeline_mode = #tpu.pipeline_mode<synchronous>, transform_indices = @transform_7, window_bounds = array<i64: 1, 4>}, {pipeline_mode = #tpu.pipeline_mode<synchronous>, transform_indices = @transform_8, window_bounds = array<i64: 16, 4>}, {pipeline_mode = #tpu.pipeline_mode<synchronous>, transform_indices = @transform_9, window_bounds = array<i64: 16, 1>}, {pipeline_mode = #tpu.pipeline_mode<synchronous>, transform_indices = @transform_10, window_bounds = array<i64: 4, 16>}, {pipeline_mode = #tpu.pipeline_mode<synchronous>, transform_indices = @transform_11, window_bounds = array<i64: 4, 1>}, {transform_indices = @transform_12, window_bounds = array<i64: 2, 4, 256>}]} {
    %c0 = arith.constant 0 : index
    %c0_0 = arith.constant 0 : index
    %0 = vector.load %arg3[%c0, %c0_0] : memref<16x4xf32, #tpu.memory_space<vmem>>, vector<16x4xf32>
    %c0_1 = arith.constant 0 : index
    %c0_2 = arith.constant 0 : index
    %1 = vector.load %arg4[%c0_1, %c0_2] : memref<16x1xf32, #tpu.memory_space<vmem>>, vector<16x1xf32>
    %c0_3 = arith.constant 0 : index
    %c0_4 = arith.constant 0 : index
    %2 = vector.load %arg5[%c0_3, %c0_4] : memref<16x9xf32, #tpu.memory_space<vmem>>, vector<16x9xf32>
    %c0_5 = arith.constant 0 : index
    %c0_6 = arith.constant 0 : index
    %3 = vector.load %arg6[%c0_5, %c0_6] : memref<16x1xf32, #tpu.memory_space<vmem>>, vector<16x1xf32>
    %c0_7 = arith.constant 0 : index
    %c0_8 = arith.constant 0 : index
    %4 = vector.load %arg11[%c0_7, %c0_8] : memref<4x16xf32, #tpu.memory_space<vmem>>, vector<4x16xf32>
    %c0_9 = arith.constant 0 : index
    %c0_10 = arith.constant 0 : index
    %5 = vector.load %arg12[%c0_9, %c0_10] : memref<4x1xf32, #tpu.memory_space<vmem>>, vector<4x1xf32>
    %c0_11 = arith.constant 0 : index
    %c0_12 = arith.constant 0 : index
    %6 = vector.load %arg2[%c0_11, %c0_12] : memref<8x256xf32, #tpu.memory_space<vmem>>, vector<8x256xf32>
    %c0_13 = arith.constant 0 : index
    %c0_14 = arith.constant 0 : index
    %c0_15 = arith.constant 0 : index
    %7 = vector.load %arg1[%c0_13, %c0_14, %c0_15] : memref<2x4x256xf32, #tpu.memory_space<vmem>>, vector<1x4x256xf32>
    %8 = vector.shape_cast %7 : vector<1x4x256xf32> to vector<4x256xf32>
    %cst = arith.constant dense<0.000000e+00> : vector<16x256xf32>
    %9 = tpu.matmul %0, %8, %cst {dimension_numbers = #tpu.dot_dimension_numbers<[1], [0], [0], [1], [0, 0, 1, 1], [], []>} : vector<16x4xf32>, vector<4x256xf32>, vector<16x256xf32> -> vector<16x256xf32>
    %10 = vector.broadcast %1 : vector<16x1xf32> to vector<16x256xf32>
    %11 = arith.addf %9, %10 : vector<16x256xf32>
    %cst_16 = arith.constant 0.000000e+00 : f32
    %cst_17 = arith.constant 6.000000e+00 : f32
    %12 = vector.broadcast %cst_16 : f32 to vector<16x256xf32>
    %13 = arith.maximumf %12, %11 : vector<16x256xf32>
    %14 = vector.broadcast %cst_17 : f32 to vector<16x256xf32>
    %15 = arith.minimumf %14, %13 : vector<16x256xf32>
    %16 = vector.extract_strided_slice %2 {offsets = [0, 4], sizes = [16, 1], strides = [1, 1]} : vector<16x9xf32> to vector<16x1xf32>
    %17 = vector.broadcast %16 : vector<16x1xf32> to vector<16x256xf32>
    %18 = arith.mulf %17, %15 : vector<16x256xf32>
    %c17_i32 = arith.constant 17 : i32
    %19 = tpu.dynamic_rotate %15 by %c17_i32 dim 1 : vector<16x256xf32>, i32 -> vector<16x256xf32>
    %20 = vector.extract_strided_slice %2 {offsets = [0, 0], sizes = [16, 1], strides = [1, 1]} : vector<16x9xf32> to vector<16x1xf32>
    %21 = vector.extract_strided_slice %6 {offsets = [0, 0], sizes = [1, 256], strides = [1, 1]} : vector<8x256xf32> to vector<1x256xf32>
    %22 = vector.broadcast %21 : vector<1x256xf32> to vector<16x256xf32>
    %23 = arith.mulf %19, %22 : vector<16x256xf32>
    %24 = vector.broadcast %20 : vector<16x1xf32> to vector<16x256xf32>
    %25 = arith.mulf %24, %23 : vector<16x256xf32>
    %26 = arith.addf %18, %25 : vector<16x256xf32>
    %c16_i32 = arith.constant 16 : i32
    %27 = tpu.dynamic_rotate %15 by %c16_i32 dim 1 : vector<16x256xf32>, i32 -> vector<16x256xf32>
    %28 = vector.extract_strided_slice %2 {offsets = [0, 1], sizes = [16, 1], strides = [1, 1]} : vector<16x9xf32> to vector<16x1xf32>
    %29 = vector.extract_strided_slice %6 {offsets = [1, 0], sizes = [1, 256], strides = [1, 1]} : vector<8x256xf32> to vector<1x256xf32>
    %30 = vector.broadcast %29 : vector<1x256xf32> to vector<16x256xf32>
    %31 = arith.mulf %27, %30 : vector<16x256xf32>
    %32 = vector.broadcast %28 : vector<16x1xf32> to vector<16x256xf32>
    %33 = arith.mulf %32, %31 : vector<16x256xf32>
    %34 = arith.addf %26, %33 : vector<16x256xf32>
    %c15_i32 = arith.constant 15 : i32
    %35 = tpu.dynamic_rotate %15 by %c15_i32 dim 1 : vector<16x256xf32>, i32 -> vector<16x256xf32>
    %36 = vector.extract_strided_slice %2 {offsets = [0, 2], sizes = [16, 1], strides = [1, 1]} : vector<16x9xf32> to vector<16x1xf32>
    %37 = vector.extract_strided_slice %6 {offsets = [2, 0], sizes = [1, 256], strides = [1, 1]} : vector<8x256xf32> to vector<1x256xf32>
    %38 = vector.broadcast %37 : vector<1x256xf32> to vector<16x256xf32>
    %39 = arith.mulf %35, %38 : vector<16x256xf32>
    %40 = vector.broadcast %36 : vector<16x1xf32> to vector<16x256xf32>
    %41 = arith.mulf %40, %39 : vector<16x256xf32>
    %42 = arith.addf %34, %41 : vector<16x256xf32>
    %c1_i32 = arith.constant 1 : i32
    %43 = tpu.dynamic_rotate %15 by %c1_i32 dim 1 : vector<16x256xf32>, i32 -> vector<16x256xf32>
    %44 = vector.extract_strided_slice %2 {offsets = [0, 3], sizes = [16, 1], strides = [1, 1]} : vector<16x9xf32> to vector<16x1xf32>
    %45 = vector.extract_strided_slice %6 {offsets = [3, 0], sizes = [1, 256], strides = [1, 1]} : vector<8x256xf32> to vector<1x256xf32>
    %46 = vector.broadcast %45 : vector<1x256xf32> to vector<16x256xf32>
    %47 = arith.mulf %43, %46 : vector<16x256xf32>
    %48 = vector.broadcast %44 : vector<16x1xf32> to vector<16x256xf32>
    %49 = arith.mulf %48, %47 : vector<16x256xf32>
    %50 = arith.addf %42, %49 : vector<16x256xf32>
    %c255_i32 = arith.constant 255 : i32
    %51 = tpu.dynamic_rotate %15 by %c255_i32 dim 1 : vector<16x256xf32>, i32 -> vector<16x256xf32>
    %52 = vector.extract_strided_slice %2 {offsets = [0, 5], sizes = [16, 1], strides = [1, 1]} : vector<16x9xf32> to vector<16x1xf32>
    %53 = vector.extract_strided_slice %6 {offsets = [4, 0], sizes = [1, 256], strides = [1, 1]} : vector<8x256xf32> to vector<1x256xf32>
    %54 = vector.broadcast %53 : vector<1x256xf32> to vector<16x256xf32>
    %55 = arith.mulf %51, %54 : vector<16x256xf32>
    %56 = vector.broadcast %52 : vector<16x1xf32> to vector<16x256xf32>
    %57 = arith.mulf %56, %55 : vector<16x256xf32>
    %58 = arith.addf %50, %57 : vector<16x256xf32>
    %c241_i32 = arith.constant 241 : i32
    %59 = tpu.dynamic_rotate %15 by %c241_i32 dim 1 : vector<16x256xf32>, i32 -> vector<16x256xf32>
    %60 = vector.extract_strided_slice %2 {offsets = [0, 6], sizes = [16, 1], strides = [1, 1]} : vector<16x9xf32> to vector<16x1xf32>
    %61 = vector.extract_strided_slice %6 {offsets = [5, 0], sizes = [1, 256], strides = [1, 1]} : vector<8x256xf32> to vector<1x256xf32>
    %62 = vector.broadcast %61 : vector<1x256xf32> to vector<16x256xf32>
    %63 = arith.mulf %59, %62 : vector<16x256xf32>
    %64 = vector.broadcast %60 : vector<16x1xf32> to vector<16x256xf32>
    %65 = arith.mulf %64, %63 : vector<16x256xf32>
    %66 = arith.addf %58, %65 : vector<16x256xf32>
    %c240_i32 = arith.constant 240 : i32
    %67 = tpu.dynamic_rotate %15 by %c240_i32 dim 1 : vector<16x256xf32>, i32 -> vector<16x256xf32>
    %68 = vector.extract_strided_slice %2 {offsets = [0, 7], sizes = [16, 1], strides = [1, 1]} : vector<16x9xf32> to vector<16x1xf32>
    %69 = vector.extract_strided_slice %6 {offsets = [6, 0], sizes = [1, 256], strides = [1, 1]} : vector<8x256xf32> to vector<1x256xf32>
    %70 = vector.broadcast %69 : vector<1x256xf32> to vector<16x256xf32>
    %71 = arith.mulf %67, %70 : vector<16x256xf32>
    %72 = vector.broadcast %68 : vector<16x1xf32> to vector<16x256xf32>
    %73 = arith.mulf %72, %71 : vector<16x256xf32>
    %74 = arith.addf %66, %73 : vector<16x256xf32>
    %c239_i32 = arith.constant 239 : i32
    %75 = tpu.dynamic_rotate %15 by %c239_i32 dim 1 : vector<16x256xf32>, i32 -> vector<16x256xf32>
    %76 = vector.extract_strided_slice %2 {offsets = [0, 8], sizes = [16, 1], strides = [1, 1]} : vector<16x9xf32> to vector<16x1xf32>
    %77 = vector.extract_strided_slice %6 {offsets = [7, 0], sizes = [1, 256], strides = [1, 1]} : vector<8x256xf32> to vector<1x256xf32>
    %78 = vector.broadcast %77 : vector<1x256xf32> to vector<16x256xf32>
    %79 = arith.mulf %75, %78 : vector<16x256xf32>
    %80 = vector.broadcast %76 : vector<16x1xf32> to vector<16x256xf32>
    %81 = arith.mulf %80, %79 : vector<16x256xf32>
    %82 = arith.addf %74, %81 : vector<16x256xf32>
    %83 = vector.broadcast %3 : vector<16x1xf32> to vector<16x256xf32>
    %84 = arith.addf %82, %83 : vector<16x256xf32>
    %cst_18 = arith.constant 0.000000e+00 : f32
    %cst_19 = arith.constant 6.000000e+00 : f32
    %85 = vector.broadcast %cst_18 : f32 to vector<16x256xf32>
    %86 = arith.maximumf %85, %84 : vector<16x256xf32>
    %87 = vector.broadcast %cst_19 : f32 to vector<16x256xf32>
    %88 = arith.minimumf %87, %86 : vector<16x256xf32>
    %cst_20 = arith.constant dense<0.000000e+00> : vector<16xf32>
    %89 = vector.multi_reduction <add>, %88, %cst_20 [1] : vector<16x256xf32> to vector<16xf32>
    %90 = vector.shape_cast %89 : vector<16xf32> to vector<16x1xf32>
    %cst_21 = arith.constant 3.906250e-03 : f32
    %91 = vector.broadcast %cst_21 : f32 to vector<16x1xf32>
    %92 = arith.mulf %90, %91 : vector<16x1xf32>
    %c0_22 = arith.constant 0 : index
    %c0_23 = arith.constant 0 : index
    %93 = vector.load %arg7[%c0_22, %c0_23] : memref<16x4xf32, #tpu.memory_space<vmem>>, vector<16x4xf32>
    %94 = vector.broadcast %92 : vector<16x1xf32> to vector<16x4xf32>
    %95 = arith.mulf %93, %94 : vector<16x4xf32>
    %cst_24 = arith.constant dense<0.000000e+00> : vector<4xf32>
    %96 = vector.multi_reduction <add>, %95, %cst_24 [0] : vector<16x4xf32> to vector<4xf32>
    %97 = vector.shape_cast %96 : vector<4xf32> to vector<1x4xf32>
    %c0_25 = arith.constant 0 : index
    %c0_26 = arith.constant 0 : index
    %98 = vector.load %arg8[%c0_25, %c0_26] : memref<1x4xf32, #tpu.memory_space<vmem>>, vector<1x4xf32>
    %99 = arith.addf %97, %98 : vector<1x4xf32>
    %cst_27 = arith.constant 0.000000e+00 : f32
    %100 = vector.broadcast %cst_27 : f32 to vector<1x4xf32>
    %101 = arith.maximumf %99, %100 : vector<1x4xf32>
    %c0_28 = arith.constant 0 : index
    %c0_29 = arith.constant 0 : index
    %102 = vector.load %arg9[%c0_28, %c0_29] : memref<16x4xf32, #tpu.memory_space<vmem>>, vector<16x4xf32>
    %103 = vector.broadcast %101 : vector<1x4xf32> to vector<16x4xf32>
    %104 = arith.mulf %102, %103 : vector<16x4xf32>
    %cst_30 = arith.constant dense<0.000000e+00> : vector<16xf32>
    %105 = vector.multi_reduction <add>, %104, %cst_30 [1] : vector<16x4xf32> to vector<16xf32>
    %106 = vector.shape_cast %105 : vector<16xf32> to vector<16x1xf32>
    %c0_31 = arith.constant 0 : index
    %c0_32 = arith.constant 0 : index
    %107 = vector.load %arg10[%c0_31, %c0_32] : memref<16x1xf32, #tpu.memory_space<vmem>>, vector<16x1xf32>
    %108 = arith.addf %106, %107 : vector<16x1xf32>
    %cst_33 = arith.constant 0.000000e+00 : f32
    %109 = vector.broadcast %cst_33 : f32 to vector<16x1xf32>
    %110 = arith.subf %109, %108 : vector<16x1xf32>
    %111 = math.exp %110 : vector<16x1xf32>
    %cst_34 = arith.constant 1.000000e+00 : f32
    %112 = vector.broadcast %cst_34 : f32 to vector<16x1xf32>
    %113 = arith.addf %112, %111 : vector<16x1xf32>
    %114 = tpu.reciprocal %113 {approx = true} : vector<16x1xf32> -> vector<16x1xf32>
    %115 = vector.broadcast %114 : vector<16x1xf32> to vector<16x256xf32>
    %116 = arith.mulf %88, %115 : vector<16x256xf32>
    %cst_35 = arith.constant dense<0.000000e+00> : vector<4x256xf32>
    %117 = tpu.matmul %4, %116, %cst_35 {dimension_numbers = #tpu.dot_dimension_numbers<[1], [0], [0], [1], [0, 0, 1, 1], [], []>} : vector<4x16xf32>, vector<16x256xf32>, vector<4x256xf32> -> vector<4x256xf32>
    %118 = vector.broadcast %5 : vector<4x1xf32> to vector<4x256xf32>
    %119 = arith.addf %117, %118 : vector<4x256xf32>
    %120 = arith.addf %8, %119 : vector<4x256xf32>
    %c0_36 = arith.constant 0 : index
    %c0_37 = arith.constant 0 : index
    %c0_38 = arith.constant 0 : index
    %121 = vector.load %arg13[%c0_36, %c0_37, %c0_38] : memref<2x4x256xf32, #tpu.memory_space<vmem>>, vector<1x4x256xf32>
    %122 = vector.shape_cast %121 : vector<1x4x256xf32> to vector<4x256xf32>
    %123 = vector.shape_cast %120 : vector<4x256xf32> to vector<1x4x256xf32>
    tpu.vector_store %arg13[%c0_36, %c0_37, %c0_38], %123 {strides = array<i32>} : memref<2x4x256xf32, #tpu.memory_space<vmem>>, vector<1x4x256xf32>,
    %c1 = arith.constant 1 : index
    %c0_39 = arith.constant 0 : index
    %c0_40 = arith.constant 0 : index
    %124 = vector.load %arg1[%c1, %c0_39, %c0_40] : memref<2x4x256xf32, #tpu.memory_space<vmem>>, vector<1x4x256xf32>
    %125 = vector.shape_cast %124 : vector<1x4x256xf32> to vector<4x256xf32>
    %cst_41 = arith.constant dense<0.000000e+00> : vector<16x256xf32>
    %126 = tpu.matmul %0, %125, %cst_41 {dimension_numbers = #tpu.dot_dimension_numbers<[1], [0], [0], [1], [0, 0, 1, 1], [], []>} : vector<16x4xf32>, vector<4x256xf32>, vector<16x256xf32> -> vector<16x256xf32>
    %127 = vector.broadcast %1 : vector<16x1xf32> to vector<16x256xf32>
    %128 = arith.addf %126, %127 : vector<16x256xf32>
    %cst_42 = arith.constant 0.000000e+00 : f32
    %cst_43 = arith.constant 6.000000e+00 : f32
    %129 = vector.broadcast %cst_42 : f32 to vector<16x256xf32>
    %130 = arith.maximumf %129, %128 : vector<16x256xf32>
    %131 = vector.broadcast %cst_43 : f32 to vector<16x256xf32>
    %132 = arith.minimumf %131, %130 : vector<16x256xf32>
    %133 = vector.extract_strided_slice %2 {offsets = [0, 4], sizes = [16, 1], strides = [1, 1]} : vector<16x9xf32> to vector<16x1xf32>
    %134 = vector.broadcast %133 : vector<16x1xf32> to vector<16x256xf32>
    %135 = arith.mulf %134, %132 : vector<16x256xf32>
    %c17_i32_44 = arith.constant 17 : i32
    %136 = tpu.dynamic_rotate %132 by %c17_i32_44 dim 1 : vector<16x256xf32>, i32 -> vector<16x256xf32>
    %137 = vector.extract_strided_slice %2 {offsets = [0, 0], sizes = [16, 1], strides = [1, 1]} : vector<16x9xf32> to vector<16x1xf32>
    %138 = vector.extract_strided_slice %6 {offsets = [0, 0], sizes = [1, 256], strides = [1, 1]} : vector<8x256xf32> to vector<1x256xf32>
    %139 = vector.broadcast %138 : vector<1x256xf32> to vector<16x256xf32>
    %140 = arith.mulf %136, %139 : vector<16x256xf32>
    %141 = vector.broadcast %137 : vector<16x1xf32> to vector<16x256xf32>
    %142 = arith.mulf %141, %140 : vector<16x256xf32>
    %143 = arith.addf %135, %142 : vector<16x256xf32>
    %c16_i32_45 = arith.constant 16 : i32
    %144 = tpu.dynamic_rotate %132 by %c16_i32_45 dim 1 : vector<16x256xf32>, i32 -> vector<16x256xf32>
    %145 = vector.extract_strided_slice %2 {offsets = [0, 1], sizes = [16, 1], strides = [1, 1]} : vector<16x9xf32> to vector<16x1xf32>
    %146 = vector.extract_strided_slice %6 {offsets = [1, 0], sizes = [1, 256], strides = [1, 1]} : vector<8x256xf32> to vector<1x256xf32>
    %147 = vector.broadcast %146 : vector<1x256xf32> to vector<16x256xf32>
    %148 = arith.mulf %144, %147 : vector<16x256xf32>
    %149 = vector.broadcast %145 : vector<16x1xf32> to vector<16x256xf32>
    %150 = arith.mulf %149, %148 : vector<16x256xf32>
    %151 = arith.addf %143, %150 : vector<16x256xf32>
    %c15_i32_46 = arith.constant 15 : i32
    %152 = tpu.dynamic_rotate %132 by %c15_i32_46 dim 1 : vector<16x256xf32>, i32 -> vector<16x256xf32>
    %153 = vector.extract_strided_slice %2 {offsets = [0, 2], sizes = [16, 1], strides = [1, 1]} : vector<16x9xf32> to vector<16x1xf32>
    %154 = vector.extract_strided_slice %6 {offsets = [2, 0], sizes = [1, 256], strides = [1, 1]} : vector<8x256xf32> to vector<1x256xf32>
    %155 = vector.broadcast %154 : vector<1x256xf32> to vector<16x256xf32>
    %156 = arith.mulf %152, %155 : vector<16x256xf32>
    %157 = vector.broadcast %153 : vector<16x1xf32> to vector<16x256xf32>
    %158 = arith.mulf %157, %156 : vector<16x256xf32>
    %159 = arith.addf %151, %158 : vector<16x256xf32>
    %c1_i32_47 = arith.constant 1 : i32
    %160 = tpu.dynamic_rotate %132 by %c1_i32_47 dim 1 : vector<16x256xf32>, i32 -> vector<16x256xf32>
    %161 = vector.extract_strided_slice %2 {offsets = [0, 3], sizes = [16, 1], strides = [1, 1]} : vector<16x9xf32> to vector<16x1xf32>
    %162 = vector.extract_strided_slice %6 {offsets = [3, 0], sizes = [1, 256], strides = [1, 1]} : vector<8x256xf32> to vector<1x256xf32>
    %163 = vector.broadcast %162 : vector<1x256xf32> to vector<16x256xf32>
    %164 = arith.mulf %160, %163 : vector<16x256xf32>
    %165 = vector.broadcast %161 : vector<16x1xf32> to vector<16x256xf32>
    %166 = arith.mulf %165, %164 : vector<16x256xf32>
    %167 = arith.addf %159, %166 : vector<16x256xf32>
    %c255_i32_48 = arith.constant 255 : i32
    %168 = tpu.dynamic_rotate %132 by %c255_i32_48 dim 1 : vector<16x256xf32>, i32 -> vector<16x256xf32>
    %169 = vector.extract_strided_slice %2 {offsets = [0, 5], sizes = [16, 1], strides = [1, 1]} : vector<16x9xf32> to vector<16x1xf32>
    %170 = vector.extract_strided_slice %6 {offsets = [4, 0], sizes = [1, 256], strides = [1, 1]} : vector<8x256xf32> to vector<1x256xf32>
    %171 = vector.broadcast %170 : vector<1x256xf32> to vector<16x256xf32>
    %172 = arith.mulf %168, %171 : vector<16x256xf32>
    %173 = vector.broadcast %169 : vector<16x1xf32> to vector<16x256xf32>
    %174 = arith.mulf %173, %172 : vector<16x256xf32>
    %175 = arith.addf %167, %174 : vector<16x256xf32>
    %c241_i32_49 = arith.constant 241 : i32
    %176 = tpu.dynamic_rotate %132 by %c241_i32_49 dim 1 : vector<16x256xf32>, i32 -> vector<16x256xf32>
    %177 = vector.extract_strided_slice %2 {offsets = [0, 6], sizes = [16, 1], strides = [1, 1]} : vector<16x9xf32> to vector<16x1xf32>
    %178 = vector.extract_strided_slice %6 {offsets = [5, 0], sizes = [1, 256], strides = [1, 1]} : vector<8x256xf32> to vector<1x256xf32>
    %179 = vector.broadcast %178 : vector<1x256xf32> to vector<16x256xf32>
    %180 = arith.mulf %176, %179 : vector<16x256xf32>
    %181 = vector.broadcast %177 : vector<16x1xf32> to vector<16x256xf32>
    %182 = arith.mulf %181, %180 : vector<16x256xf32>
    %183 = arith.addf %175, %182 : vector<16x256xf32>
    %c240_i32_50 = arith.constant 240 : i32
    %184 = tpu.dynamic_rotate %132 by %c240_i32_50 dim 1 : vector<16x256xf32>, i32 -> vector<16x256xf32>
    %185 = vector.extract_strided_slice %2 {offsets = [0, 7], sizes = [16, 1], strides = [1, 1]} : vector<16x9xf32> to vector<16x1xf32>
    %186 = vector.extract_strided_slice %6 {offsets = [6, 0], sizes = [1, 256], strides = [1, 1]} : vector<8x256xf32> to vector<1x256xf32>
    %187 = vector.broadcast %186 : vector<1x256xf32> to vector<16x256xf32>
    %188 = arith.mulf %184, %187 : vector<16x256xf32>
    %189 = vector.broadcast %185 : vector<16x1xf32> to vector<16x256xf32>
    %190 = arith.mulf %189, %188 : vector<16x256xf32>
    %191 = arith.addf %183, %190 : vector<16x256xf32>
    %c239_i32_51 = arith.constant 239 : i32
    %192 = tpu.dynamic_rotate %132 by %c239_i32_51 dim 1 : vector<16x256xf32>, i32 -> vector<16x256xf32>
    %193 = vector.extract_strided_slice %2 {offsets = [0, 8], sizes = [16, 1], strides = [1, 1]} : vector<16x9xf32> to vector<16x1xf32>
    %194 = vector.extract_strided_slice %6 {offsets = [7, 0], sizes = [1, 256], strides = [1, 1]} : vector<8x256xf32> to vector<1x256xf32>
    %195 = vector.broadcast %194 : vector<1x256xf32> to vector<16x256xf32>
    %196 = arith.mulf %192, %195 : vector<16x256xf32>
    %197 = vector.broadcast %193 : vector<16x1xf32> to vector<16x256xf32>
    %198 = arith.mulf %197, %196 : vector<16x256xf32>
    %199 = arith.addf %191, %198 : vector<16x256xf32>
    %200 = vector.broadcast %3 : vector<16x1xf32> to vector<16x256xf32>
    %201 = arith.addf %199, %200 : vector<16x256xf32>
    %cst_52 = arith.constant 0.000000e+00 : f32
    %cst_53 = arith.constant 6.000000e+00 : f32
    %202 = vector.broadcast %cst_52 : f32 to vector<16x256xf32>
    %203 = arith.maximumf %202, %201 : vector<16x256xf32>
    %204 = vector.broadcast %cst_53 : f32 to vector<16x256xf32>
    %205 = arith.minimumf %204, %203 : vector<16x256xf32>
    %cst_54 = arith.constant dense<0.000000e+00> : vector<16xf32>
    %206 = vector.multi_reduction <add>, %205, %cst_54 [1] : vector<16x256xf32> to vector<16xf32>
    %207 = vector.shape_cast %206 : vector<16xf32> to vector<16x1xf32>
    %cst_55 = arith.constant 3.906250e-03 : f32
    %208 = vector.broadcast %cst_55 : f32 to vector<16x1xf32>
    %209 = arith.mulf %207, %208 : vector<16x1xf32>
    %c0_56 = arith.constant 0 : index
    %c0_57 = arith.constant 0 : index
    %210 = vector.load %arg7[%c0_56, %c0_57] : memref<16x4xf32, #tpu.memory_space<vmem>>, vector<16x4xf32>
    %211 = vector.broadcast %209 : vector<16x1xf32> to vector<16x4xf32>
    %212 = arith.mulf %210, %211 : vector<16x4xf32>
    %cst_58 = arith.constant dense<0.000000e+00> : vector<4xf32>
    %213 = vector.multi_reduction <add>, %212, %cst_58 [0] : vector<16x4xf32> to vector<4xf32>
    %214 = vector.shape_cast %213 : vector<4xf32> to vector<1x4xf32>
    %c0_59 = arith.constant 0 : index
    %c0_60 = arith.constant 0 : index
    %215 = vector.load %arg8[%c0_59, %c0_60] : memref<1x4xf32, #tpu.memory_space<vmem>>, vector<1x4xf32>
    %216 = arith.addf %214, %215 : vector<1x4xf32>
    %cst_61 = arith.constant 0.000000e+00 : f32
    %217 = vector.broadcast %cst_61 : f32 to vector<1x4xf32>
    %218 = arith.maximumf %216, %217 : vector<1x4xf32>
    %c0_62 = arith.constant 0 : index
    %c0_63 = arith.constant 0 : index
    %219 = vector.load %arg9[%c0_62, %c0_63] : memref<16x4xf32, #tpu.memory_space<vmem>>, vector<16x4xf32>
    %220 = vector.broadcast %218 : vector<1x4xf32> to vector<16x4xf32>
    %221 = arith.mulf %219, %220 : vector<16x4xf32>
    %cst_64 = arith.constant dense<0.000000e+00> : vector<16xf32>
    %222 = vector.multi_reduction <add>, %221, %cst_64 [1] : vector<16x4xf32> to vector<16xf32>
    %223 = vector.shape_cast %222 : vector<16xf32> to vector<16x1xf32>
    %c0_65 = arith.constant 0 : index
    %c0_66 = arith.constant 0 : index
    %224 = vector.load %arg10[%c0_65, %c0_66] : memref<16x1xf32, #tpu.memory_space<vmem>>, vector<16x1xf32>
    %225 = arith.addf %223, %224 : vector<16x1xf32>
    %cst_67 = arith.constant 0.000000e+00 : f32
    %226 = vector.broadcast %cst_67 : f32 to vector<16x1xf32>
    %227 = arith.subf %226, %225 : vector<16x1xf32>
    %228 = math.exp %227 : vector<16x1xf32>
    %cst_68 = arith.constant 1.000000e+00 : f32
    %229 = vector.broadcast %cst_68 : f32 to vector<16x1xf32>
    %230 = arith.addf %229, %228 : vector<16x1xf32>
    %231 = tpu.reciprocal %230 {approx = true} : vector<16x1xf32> -> vector<16x1xf32>
    %232 = vector.broadcast %231 : vector<16x1xf32> to vector<16x256xf32>
    %233 = arith.mulf %205, %232 : vector<16x256xf32>
    %cst_69 = arith.constant dense<0.000000e+00> : vector<4x256xf32>
    %234 = tpu.matmul %4, %233, %cst_69 {dimension_numbers = #tpu.dot_dimension_numbers<[1], [0], [0], [1], [0, 0, 1, 1], [], []>} : vector<4x16xf32>, vector<16x256xf32>, vector<4x256xf32> -> vector<4x256xf32>
    %235 = vector.broadcast %5 : vector<4x1xf32> to vector<4x256xf32>
    %236 = arith.addf %234, %235 : vector<4x256xf32>
    %237 = arith.addf %125, %236 : vector<4x256xf32>
    %c1_70 = arith.constant 1 : index
    %c0_71 = arith.constant 0 : index
    %c0_72 = arith.constant 0 : index
    %238 = vector.load %arg13[%c1_70, %c0_71, %c0_72] : memref<2x4x256xf32, #tpu.memory_space<vmem>>, vector<1x4x256xf32>
    %239 = vector.shape_cast %238 : vector<1x4x256xf32> to vector<4x256xf32>
    %240 = vector.shape_cast %237 : vector<4x256xf32> to vector<1x4x256xf32>
    tpu.vector_store %arg13[%c1_70, %c0_71, %c0_72], %240 {strides = array<i32>} : memref<2x4x256xf32, #tpu.memory_space<vmem>>, vector<1x4x256xf32>,
    return
  }
  func.func @transform_0(%arg0: i32) -> (i32, i32, i32) {
    %c0_i32 = arith.constant 0 : i32
    %c0_i32_0 = arith.constant 0 : i32
    %c0_i32_1 = arith.constant 0 : i32
    return %arg0, %c0_i32, %c0_i32_0 : i32, i32, i32
  }
  func.func @transform_1(%arg0: i32) -> (i32, i32) {
    %c0_i32 = arith.constant 0 : i32
    %c0_i32_0 = arith.constant 0 : i32
    %c0_i32_1 = arith.constant 0 : i32
    return %c0_i32, %c0_i32_0 : i32, i32
  }
  func.func @transform_2(%arg0: i32) -> (i32, i32) {
    %c0_i32 = arith.constant 0 : i32
    %c0_i32_0 = arith.constant 0 : i32
    %c0_i32_1 = arith.constant 0 : i32
    return %c0_i32, %c0_i32_0 : i32, i32
  }
  func.func @transform_3(%arg0: i32) -> (i32, i32) {
    %c0_i32 = arith.constant 0 : i32
    %c0_i32_0 = arith.constant 0 : i32
    %c0_i32_1 = arith.constant 0 : i32
    return %c0_i32, %c0_i32_0 : i32, i32
  }
  func.func @transform_4(%arg0: i32) -> (i32, i32) {
    %c0_i32 = arith.constant 0 : i32
    %c0_i32_0 = arith.constant 0 : i32
    %c0_i32_1 = arith.constant 0 : i32
    return %c0_i32, %c0_i32_0 : i32, i32
  }
  func.func @transform_5(%arg0: i32) -> (i32, i32) {
    %c0_i32 = arith.constant 0 : i32
    %c0_i32_0 = arith.constant 0 : i32
    %c0_i32_1 = arith.constant 0 : i32
    return %c0_i32, %c0_i32_0 : i32, i32
  }
  func.func @transform_6(%arg0: i32) -> (i32, i32) {
    %c0_i32 = arith.constant 0 : i32
    %c0_i32_0 = arith.constant 0 : i32
    %c0_i32_1 = arith.constant 0 : i32
    return %c0_i32, %c0_i32_0 : i32, i32
  }
  func.func @transform_7(%arg0: i32) -> (i32, i32) {
    %c0_i32 = arith.constant 0 : i32
    %c0_i32_0 = arith.constant 0 : i32
    %c0_i32_1 = arith.constant 0 : i32
    return %c0_i32, %c0_i32_0 : i32, i32
  }
  func.func @transform_8(%arg0: i32) -> (i32, i32) {
    %c0_i32 = arith.constant 0 : i32
    %c0_i32_0 = arith.constant 0 : i32
    %c0_i32_1 = arith.constant 0 : i32
    return %c0_i32, %c0_i32_0 : i32, i32
  }
  func.func @transform_9(%arg0: i32) -> (i32, i32) {
    %c0_i32 = arith.constant 0 : i32
    %c0_i32_0 = arith.constant 0 : i32
    %c0_i32_1 = arith.constant 0 : i32
    return %c0_i32, %c0_i32_0 : i32, i32
  }
  func.func @transform_10(%arg0: i32) -> (i32, i32) {
    %c0_i32 = arith.constant 0 : i32
    %c0_i32_0 = arith.constant 0 : i32
    %c0_i32_1 = arith.constant 0 : i32
    return %c0_i32, %c0_i32_0 : i32, i32
  }
  func.func @transform_11(%arg0: i32) -> (i32, i32) {
    %c0_i32 = arith.constant 0 : i32
    %c0_i32_0 = arith.constant 0 : i32
    %c0_i32_1 = arith.constant 0 : i32
    return %c0_i32, %c0_i32_0 : i32, i32
  }
  func.func @transform_12(%arg0: i32) -> (i32, i32, i32) {
    %c0_i32 = arith.constant 0 : i32
    %c0_i32_0 = arith.constant 0 : i32
    %c0_i32_1 = arith.constant 0 : i32
    return %arg0, %c0_i32, %c0_i32_0 : i32, i32, i32
  }
}

</mosaic_0001>

<llo_original>
// kernel: tpu_custom_call.1
$region0: #{tpu_custom_call.1}
  #allocation0 [shape = 'u32[]', space=smem, size = 0x4, offset = 0x4, fixed_abs, tag = 'smem constant byte address 0x4 - core index']
  #allocation1 [shape = 'u32[144,128]{1,0:T(1,128)}', space=vmem, size = 0x12000, scoped, tag = 'internal scratch']
  %s0 = inlined_call_operand.vmem [shape: f32[2,4,256], index: 0, kind: input, shape index: {}]
  %s1 = inlined_call_operand.vmem [shape: f32[8,256], index: 1, kind: input, shape index: {}]
  %s2 = inlined_call_operand.vmem [shape: f32[16,4], index: 2, kind: input, shape index: {}]
  %s3 = inlined_call_operand.vmem [shape: f32[16,1], index: 3, kind: input, shape index: {}]
  %s4 = inlined_call_operand.vmem [shape: f32[16,9], index: 4, kind: input, shape index: {}]
  %s5 = inlined_call_operand.vmem [shape: f32[16,1], index: 5, kind: input, shape index: {}]
  %s6 = inlined_call_operand.vmem [shape: f32[16,4], index: 6, kind: input, shape index: {}]
  %s7 = inlined_call_operand.vmem [shape: f32[1,4], index: 7, kind: input, shape index: {}]
  %s8 = inlined_call_operand.vmem [shape: f32[16,4], index: 8, kind: input, shape index: {}]
  %s9 = inlined_call_operand.vmem [shape: f32[16,1], index: 9, kind: input, shape index: {}]
  %s10 = inlined_call_operand.vmem [shape: f32[4,16], index: 10, kind: input, shape index: {}]
  %s11 = inlined_call_operand.vmem [shape: f32[4,1], index: 11, kind: input, shape index: {}]
  %s12 = inlined_call_operand.hbm [shape: f32[2,4,256], index: 12, kind: output, shape index: {}]
  %s13 = sld [smem:[#allocation0]]
  $region58: #{tpu_custom_call.1} parent=0
    _
  %s15 = ssub.s32 1, %s13
  %s16 = scalar_select 0, %s15, %s13
  $region1: #{tpu_custom_call.1} parent=0
    #allocation2 [shape = 'u8[8192]{0}', space=vmem, size = 0x2000, scoped, tag = 'output window, operand 0, single buffered']
    #allocation3 [shape = 's32[1]{0}', space=sflag, size = 0x4, scoped, tag = 'scoped memory for tpu_custom_call.1']
    %17 = vsyncpa [#allocation3], 0
    // Predicated region
    $region2: #{tpu_custom_call.1} parent=1 // pred_check
      _
    $region3: #{tpu_custom_call.1} parent=1 // pred_check_branch
      %19 = sbr.rel (0) target = $region5
    $region4: #{tpu_custom_call.1} parent=1 // pred_region
      _
    $region5: #{tpu_custom_call.1} parent=1 // pred_fallthru
      _
    // Predicated region
    $region6: #{tpu_custom_call.1} parent=1 // pred_check
      _
    $region7: #{tpu_custom_call.1} parent=1 // pred_check_branch
      %21 = sbr.rel (0) target = $region9
    $region8: #{tpu_custom_call.1} parent=1 // pred_region
      _
    $region9: #{tpu_custom_call.1} parent=1 // pred_fallthru
      _
    // Predicated region
    $region10: #{tpu_custom_call.1} parent=1 // pred_check
      _
    $region11: #{tpu_custom_call.1} parent=1 // pred_check_branch
      %23 = sbr.rel (0) target = $region13
    $region12: #{tpu_custom_call.1} parent=1 // pred_region
      _
    $region13: #{tpu_custom_call.1} parent=1 // pred_fallthru
      _
    // Predicated region
    $region14: #{tpu_custom_call.1} parent=1 // pred_check
      _
    $region15: #{tpu_custom_call.1} parent=1 // pred_check_branch
      %25 = sbr.rel (0) target = $region17
    $region16: #{tpu_custom_call.1} parent=1 // pred_region
      _
    $region17: #{tpu_custom_call.1} parent=1 // pred_fallthru
      _
    // Predicated region
    $region18: #{tpu_custom_call.1} parent=1 // pred_check
      _
    $region19: #{tpu_custom_call.1} parent=1 // pred_check_branch
      %27 = sbr.rel (0) target = $region21
    $region20: #{tpu_custom_call.1} parent=1 // pred_region
      _
    $region21: #{tpu_custom_call.1} parent=1 // pred_fallthru
      _
    // Predicated region
    $region22: #{tpu_custom_call.1} parent=1 // pred_check
      _
    $region23: #{tpu_custom_call.1} parent=1 // pred_check_branch
      %29 = sbr.rel (0) target = $region25
    $region24: #{tpu_custom_call.1} parent=1 // pred_region
      _
    $region25: #{tpu_custom_call.1} parent=1 // pred_fallthru
      _
    // Predicated region
    $region26: #{tpu_custom_call.1} parent=1 // pred_check
      _
    $region27: #{tpu_custom_call.1} parent=1 // pred_check_branch
      %31 = sbr.rel (0) target = $region29
    $region28: #{tpu_custom_call.1} parent=1 // pred_region
      _
    $region29: #{tpu_custom_call.1} parent=1 // pred_fallthru
      _
    // Predicated region
    $region30: #{tpu_custom_call.1} parent=1 // pred_check
      _
    $region31: #{tpu_custom_call.1} parent=1 // pred_check_branch
      %33 = sbr.rel (0) target = $region33
    $region32: #{tpu_custom_call.1} parent=1 // pred_region
      _
    $region33: #{tpu_custom_call.1} parent=1 // pred_fallthru
      _
    // Predicated region
    $region34: #{tpu_custom_call.1} parent=1 // pred_check
      _
    $region35: #{tpu_custom_call.1} parent=1 // pred_check_branch
      %35 = sbr.rel (0) target = $region37
    $region36: #{tpu_custom_call.1} parent=1 // pred_region
      _
    $region37: #{tpu_custom_call.1} parent=1 // pred_fallthru
      _
    // Predicated region
    $region38: #{tpu_custom_call.1} parent=1 // pred_check
      _
    $region39: #{tpu_custom_call.1} parent=1 // pred_check_branch
      %37 = sbr.rel (0) target = $region41
    $region40: #{tpu_custom_call.1} parent=1 // pred_region
      _
    $region41: #{tpu_custom_call.1} parent=1 // pred_fallthru
      _
    // Predicated region
    $region42: #{tpu_custom_call.1} parent=1 // pred_check
      _
    $region43: #{tpu_custom_call.1} parent=1 // pred_check_branch
      %39 = sbr.rel (0) target = $region45
    $region44: #{tpu_custom_call.1} parent=1 // pred_region
      _
    $region45: #{tpu_custom_call.1} parent=1 // pred_fallthru
      _
    // Predicated region
    $region46: #{tpu_custom_call.1} parent=1 // pred_check
      _
    $region47: #{tpu_custom_call.1} parent=1 // pred_check_branch
      %41 = sbr.rel (0) target = $region49
    $region48: #{tpu_custom_call.1} parent=1 // pred_region
      _
    $region49: #{tpu_custom_call.1} parent=1 // pred_fallthru
      _
    %v42 = vld [vmem:[%s2] sm:$0xff]
    %v43 = vld [vmem:[%s2 + $0x8] sm:$0xff]
    %v44 = vld [vmem:[%s3] sm:$0xff]
    %v45 = vld [vmem:[%s3 + $0x8] sm:$0xff]
    %v46 = vld [vmem:[%s4] sm:$0xff]
    %v47 = vld [vmem:[%s4 + $0x8] sm:$0xff]
    %v48 = vld [vmem:[%s5] sm:$0xff]
    %v49 = vld [vmem:[%s5 + $0x8] sm:$0xff]
    %v50 = vld [vmem:[%s10] sm:$0xf]
    %v51 = vld [vmem:[%s11] sm:$0xf]
    %v52 = vld [vmem:[%s1] sm:$0xff]
    %v53 = vld [vmem:[%s1 + $0x8] sm:$0xff]
    %v54 = vld [vmem:[%s0] sm:$0xff]
    %56 = vset.pattern.permute.xlu0 0
    %57 = vperm.xlu0 %56, %v44
    %v58 = vpop.permute.xlu0 %57
    %61 = vset.pattern.permute.xlu0 0
    %62 = vperm.xlu0 %61, %v45
    %v63 = vpop.permute.xlu0 %62
    %v66 = vcombine.high %v54, %v54
    %vm67 = vcmask 31744
    %v69 = vsel %vm67, %v42, 0
    %v72 = vsel %vm67, %v43, 0
    %vm74 = vcmask 1043456
    %v75 = vsel %vm74, %v54, 0
    %v77 = vsel %vm74, %v66, 0
    %79 = vmatprep.subr.mxu0 %v77
    %80 = vmatpush1.msra.mxu0 %v75
    %81 = vmatprep.subr.mxu0 0.0
    %82 = vmatpush1.msra.mxu0 0.0
    %83 = vmatprep.subr.mxu0 0.0
    %84 = vmatpush1.msra.mxu0 0.0
    %85 = vmatprep.subr.mxu0 0.0
    %86 = vmatpush1.msra.mxu0 0.0
    %87 = vmatprep.subr.mxu0 0.0
    %88 = vmatpush1.msra.mxu0 0.0
    %89 = vmatprep.subr.mxu0 0.0
    %90 = vmatpush1.msra.mxu0 0.0
    %91 = vmatprep.subr.mxu0 0.0
    %92 = vmatpush1.msra.mxu0 0.0
    %93 = vmatprep.subr.mxu0 0.0
    %94 = vmatpush1.msra.mxu0 0.0
    %95 = vmatprep.subr.mxu0 0.0
    %96 = vmatpush1.msra.mxu0 0.0
    %97 = vmatprep.subr.mxu0 0.0
    %98 = vmatpush1.msra.mxu0 0.0
    %99 = vmatprep.subr.mxu0 0.0
    %100 = vmatpush1.msra.mxu0 0.0
    %101 = vmatprep.subr.mxu0 0.0
    %102 = vmatpush1.msra.mxu0 0.0
    %103 = vmatprep.subr.mxu0 0.0
    %104 = vmatpush1.msra.mxu0 0.0
    %105 = vmatprep.subr.mxu0 0.0
    %106 = vmatpush1.msra.mxu0 0.0
    %107 = vmatprep.subr.mxu0 0.0
    %108 = vmatpush1.msra.mxu0 0.0
    %109 = vmatprep.subr.mxu0 0.0
    %110 = vmatpush1.msra.mxu0 0.0
    %111 = vmatprep.subr.mxu0 0.0
    %112 = vmatpush1.msra.mxu0 0.0
    %113 = vmatprep.subr.mxu0 0.0
    %114 = vmatpush1.msra.mxu0 0.0
    %115 = vmatprep.subr.mxu0 0.0
    %116 = vmatpush1.msra.mxu0 0.0
    %117 = vmatprep.subr.mxu0 0.0
    %118 = vmatpush1.msra.mxu0 0.0
    %119 = vmatprep.subr.mxu0 0.0
    %120 = vmatpush1.msra.mxu0 0.0
    %121 = vmatprep.subr.mxu0 0.0
    %122 = vmatpush1.msra.mxu0 0.0
    %123 = vmatprep.subr.mxu0 0.0
    %124 = vmatpush1.msra.mxu0 0.0
    %125 = vmatprep.subr.mxu0 0.0
    %126 = vmatpush1.msra.mxu0 0.0
    %127 = vmatprep.subr.mxu0 0.0
    %128 = vmatpush1.msra.mxu0 0.0
    %129 = vmatprep.subr.mxu0 0.0
    %130 = vmatpush1.msra.mxu0 0.0
    %131 = vmatprep.subr.mxu0 0.0
    %132 = vmatpush1.msra.mxu0 0.0
    %133 = vmatprep.subr.mxu0 0.0
    %134 = vmatpush1.msra.mxu0 0.0
    %135 = vmatprep.subr.mxu0 0.0
    %136 = vmatpush1.msra.mxu0 0.0
    %137 = vmatprep.subr.mxu0 0.0
    %138 = vmatpush1.msra.mxu0 0.0
    %139 = vmatprep.subr.mxu0 0.0
    %140 = vmatpush1.msra.mxu0 0.0
    %141 = vmatprep.subr.mxu0 0.0
    %142 = vmatpush1.msra.mxu0 0.0
    %143 = vmatprep.mubr.f32.mxu0 0.0
    %144 = vmatmul.mubr.f32.gmra.mrb[0].mxu0 %v69
    %v145 = vpop.f32.mrb[0].mxu0
    %v146 = vadd.f32 %v58, %v145
    %v147 = vpop.f32.mrb[0].mxu0
    %v148 = vadd.f32 %v58, %v147
    %149 = vmatprep.mubr.f32.mxu0 0.0
    %150 = vmatmul.mubr.f32.gmra.mrb[0].mxu0 %v72
    %v151 = vpop.f32.mrb[0].mxu0
    %v152 = vadd.f32 %v63, %v151
    %v153 = vpop.f32.mrb[0].mxu0
    %v154 = vadd.f32 %v63, %v153
    %155 = vdwg.mxu0
    %v156 = vmax.f32 %v146, 0.0
    %v157 = vmax.f32 %v148, 0.0
    %v158 = vmax.f32 %v152, 0.0
    %v159 = vmax.f32 %v154, 0.0
    %v160 = vmin.f32 %v156, 6.0
    %v161 = vmin.f32 %v157, 6.0
    %v162 = vmin.f32 %v158, 6.0
    %v163 = vmin.f32 %v159, 6.0
    %165 = vset.pattern.permute.xlu0 4
    %166 = vperm.xlu0 %165, %v46
    %v167 = vpop.permute.xlu0 %166
    %170 = vset.pattern.permute.xlu0 4
    %171 = vperm.xlu0 %170, %v47
    %v172 = vpop.permute.xlu0 %171
    %v174 = vmul.f32 %v167, %v160
    %v175 = vmul.f32 %v167, %v161
    %v176 = vmul.f32 %v172, %v162
    %v177 = vmul.f32 %v172, %v163
    %178 = vrot.lane.b32.xlu0 %v160, 17
    %v179 = vpop.permute.xlu0 %178
    %180 = vrot.lane.b32.xlu0 %v162, 17
    %v181 = vpop.permute.xlu0 %180
    %182 = vrot.lane.b32.xlu0 %v161, 17
    %v183 = vpop.permute.xlu0 %182
    %184 = vrot.lane.b32.xlu0 %v163, 17
    %v185 = vpop.permute.xlu0 %184
    %v186 = vlaneseq
    %v187 = vand.u32 %v186, 127
    %vm188 = vcmp.lt.s32.totalorder %v187, 17
    %v189 = vsel %vm188, %v179, %v183
    %v190 = vsel %vm188, %v181, %v185
    %v191 = vsel %vm188, %v183, %v179
    %v192 = vsel %vm188, %v185, %v181
    %v193 = vlaneseq
    %v194 = vshrl.u32 %v193, 7
    %v195 = vsub.s32 0, %v194
    %v196 = vrot.slane %v52, %v195
    %v197 = vlaneseq
    %v198 = vshrl.u32 %v197, 7
    %v199 = vsub.s32 0, %v198
    %v200 = vrot.slane %v53, %v199
    %v201 = vmul.f32 %v191, %v196
    %v202 = vmul.f32 %v189, %v200
    %v203 = vmul.f32 %v192, %v196
    %v204 = vmul.f32 %v190, %v200
    %205 = vset.pattern.permute.xlu0 0
    %206 = vperm.xlu0 %205, %v46
    %v207 = vpop.permute.xlu0 %206
    %209 = vset.pattern.permute.xlu0 0
    %210 = vperm.xlu0 %209, %v47
    %v211 = vpop.permute.xlu0 %210
    %v213 = vmul.f32 %v207, %v201
    %v214 = vmul.f32 %v207, %v202
    %v215 = vmul.f32 %v211, %v203
    %v216 = vmul.f32 %v211, %v204
    %v217 = vadd.f32 %v174, %v213
    %v218 = vadd.f32 %v175, %v214
    %v219 = vadd.f32 %v176, %v215
    %v220 = vadd.f32 %v177, %v216
    %221 = vrot.lane.b32.xlu0 %v160, 16
    %v222 = vpop.permute.xlu0 %221
    %223 = vrot.lane.b32.xlu0 %v162, 16
    %v224 = vpop.permute.xlu0 %223
    %225 = vrot.lane.b32.xlu0 %v161, 16
    %v226 = vpop.permute.xlu0 %225
    %227 = vrot.lane.b32.xlu0 %v163, 16
    %v228 = vpop.permute.xlu0 %227
    %vm229 = vcmp.lt.s32.totalorder %v187, 16
    %v230 = vsel %vm229, %v222, %v226
    %v231 = vsel %vm229, %v224, %v228
    %v232 = vsel %vm229, %v226, %v222
    %v233 = vsel %vm229, %v228, %v224
    %v234 = vlaneseq
    %v235 = vshrl.u32 %v234, 7
    %v236 = vsub.s32 1, %v235
    %v237 = vrot.slane %v52, %v236
    %v238 = vlaneseq
    %v239 = vshrl.u32 %v238, 7
    %v240 = vsub.s32 1, %v239
    %v241 = vrot.slane %v53, %v240
    %v242 = vmul.f32 %v232, %v237
    %v243 = vmul.f32 %v230, %v241
    %v244 = vmul.f32 %v233, %v237
    %v245 = vmul.f32 %v231, %v241
    %246 = vset.pattern.permute.xlu0 1
    %247 = vperm.xlu0 %246, %v46
    %v248 = vpop.permute.xlu0 %247
    %250 = vset.pattern.permute.xlu0 1
    %251 = vperm.xlu0 %250, %v47
    %v252 = vpop.permute.xlu0 %251
    %v254 = vmul.f32 %v248, %v242
    %v255 = vmul.f32 %v248, %v243
    %v256 = vmul.f32 %v252, %v244
    %v257 = vmul.f32 %v252, %v245
    %v258 = vadd.f32 %v217, %v254
    %v259 = vadd.f32 %v218, %v255
    %v260 = vadd.f32 %v219, %v256
    %v261 = vadd.f32 %v220, %v257
    %262 = vrot.lane.b32.xlu0 %v160, 15
    %v263 = vpop.permute.xlu0 %262
    %264 = vrot.lane.b32.xlu0 %v162, 15
    %v265 = vpop.permute.xlu0 %264
    %266 = vrot.lane.b32.xlu0 %v161, 15
    %v267 = vpop.permute.xlu0 %266
    %268 = vrot.lane.b32.xlu0 %v163, 15
    %v269 = vpop.permute.xlu0 %268
    %vm270 = vcmp.lt.s32.totalorder %v187, 15
    %v271 = vsel %vm270, %v263, %v267
    %v272 = vsel %vm270, %v265, %v269
    %v273 = vsel %vm270, %v267, %v263
    %v274 = vsel %vm270, %v269, %v265
    %v275 = vlaneseq
    %v276 = vshrl.u32 %v275, 7
    %v277 = vsub.s32 2, %v276
    %v278 = vrot.slane %v52, %v277
    %v279 = vlaneseq
    %v280 = vshrl.u32 %v279, 7
    %v281 = vsub.s32 2, %v280
    %v282 = vrot.slane %v53, %v281
    %v283 = vmul.f32 %v273, %v278
    %v284 = vmul.f32 %v271, %v282
    %v285 = vmul.f32 %v274, %v278
    %v286 = vmul.f32 %v272, %v282
    %287 = vset.pattern.permute.xlu0 2
    %288 = vperm.xlu0 %287, %v46
    %v289 = vpop.permute.xlu0 %288
    %291 = vset.pattern.permute.xlu0 2
    %292 = vperm.xlu0 %291, %v47
    %v293 = vpop.permute.xlu0 %292
    %v295 = vmul.f32 %v289, %v283
    %v296 = vmul.f32 %v289, %v284
    %v297 = vmul.f32 %v293, %v285
    %v298 = vmul.f32 %v293, %v286
    %v299 = vadd.f32 %v258, %v295
    %v300 = vadd.f32 %v259, %v296
    %v301 = vadd.f32 %v260, %v297
    %v302 = vadd.f32 %v261, %v298
    %303 = vrot.lane.b32.xlu0 %v160, 1
    %v304 = vpop.permute.xlu0 %303
    %305 = vrot.lane.b32.xlu0 %v162, 1
    %v306 = vpop.permute.xlu0 %305
    %307 = vrot.lane.b32.xlu0 %v161, 1
    %v308 = vpop.permute.xlu0 %307
    %309 = vrot.lane.b32.xlu0 %v163, 1
    %v310 = vpop.permute.xlu0 %309
    %vm311 = vcmp.lt.s32.totalorder %v187, 1
    %v312 = vsel %vm311, %v304, %v308
    %v313 = vsel %vm311, %v306, %v310
    %v314 = vsel %vm311, %v308, %v304
    %v315 = vsel %vm311, %v310, %v306
    %v316 = vlaneseq
    %v317 = vshrl.u32 %v316, 7
    %v318 = vsub.s32 3, %v317
    %v319 = vrot.slane %v52, %v318
    %v320 = vlaneseq
    %v321 = vshrl.u32 %v320, 7
    %v322 = vsub.s32 3, %v321
    %v323 = vrot.slane %v53, %v322
    %v324 = vmul.f32 %v314, %v319
    %v325 = vmul.f32 %v312, %v323
    %v326 = vmul.f32 %v315, %v319
    %v327 = vmul.f32 %v313, %v323
    %328 = vset.pattern.permute.xlu0 3
    %329 = vperm.xlu0 %328, %v46
    %v330 = vpop.permute.xlu0 %329
    %332 = vset.pattern.permute.xlu0 3
    %333 = vperm.xlu0 %332, %v47
    %v334 = vpop.permute.xlu0 %333
    %v336 = vmul.f32 %v330, %v324
    %v337 = vmul.f32 %v330, %v325
    %v338 = vmul.f32 %v334, %v326
    %v339 = vmul.f32 %v334, %v327
    %v340 = vadd.f32 %v299, %v336
    %v341 = vadd.f32 %v300, %v337
    %v342 = vadd.f32 %v301, %v338
    %v343 = vadd.f32 %v302, %v339
    %344 = vrot.lane.b32.xlu0 %v160, 127
    %v345 = vpop.permute.xlu0 %344
    %346 = vrot.lane.b32.xlu0 %v162, 127
    %v347 = vpop.permute.xlu0 %346
    %348 = vrot.lane.b32.xlu0 %v161, 127
    %v349 = vpop.permute.xlu0 %348
    %350 = vrot.lane.b32.xlu0 %v163, 127
    %v351 = vpop.permute.xlu0 %350
    %vm352 = vcmp.lt.s32.totalorder %v187, 127
    %v353 = vsel %vm352, %v345, %v349
    %v354 = vsel %vm352, %v347, %v351
    %v355 = vsel %vm352, %v349, %v345
    %v356 = vsel %vm352, %v351, %v347
    %v357 = vlaneseq
    %v358 = vshrl.u32 %v357, 7
    %v359 = vsub.s32 4, %v358
    %v360 = vrot.slane %v52, %v359
    %v361 = vlaneseq
    %v362 = vshrl.u32 %v361, 7
    %v363 = vsub.s32 4, %v362
    %v364 = vrot.slane %v53, %v363
    %v365 = vmul.f32 %v353, %v360
    %v366 = vmul.f32 %v355, %v364
    %v367 = vmul.f32 %v354, %v360
    %v368 = vmul.f32 %v356, %v364
    %369 = vset.pattern.permute.xlu0 5
    %370 = vperm.xlu0 %369, %v46
    %v371 = vpop.permute.xlu0 %370
    %373 = vset.pattern.permute.xlu0 5
    %374 = vperm.xlu0 %373, %v47
    %v375 = vpop.permute.xlu0 %374
    %v377 = vmul.f32 %v371, %v365
    %v378 = vmul.f32 %v371, %v366
    %v379 = vmul.f32 %v375, %v367
    %v380 = vmul.f32 %v375, %v368
    %v381 = vadd.f32 %v340, %v377
    %v382 = vadd.f32 %v341, %v378
    %v383 = vadd.f32 %v342, %v379
    %v384 = vadd.f32 %v343, %v380
    %385 = vrot.lane.b32.xlu0 %v160, 113
    %v386 = vpop.permute.xlu0 %385
    %387 = vrot.lane.b32.xlu0 %v162, 113
    %v388 = vpop.permute.xlu0 %387
    %389 = vrot.lane.b32.xlu0 %v161, 113
    %v390 = vpop.permute.xlu0 %389
    %391 = vrot.lane.b32.xlu0 %v163, 113
    %v392 = vpop.permute.xlu0 %391
    %vm393 = vcmp.lt.s32.totalorder %v187, 113
    %v394 = vsel %vm393, %v386, %v390
    %v395 = vsel %vm393, %v388, %v392
    %v396 = vsel %vm393, %v390, %v386
    %v397 = vsel %vm393, %v392, %v388
    %v398 = vlaneseq
    %v399 = vshrl.u32 %v398, 7
    %v400 = vsub.s32 5, %v399
    %v401 = vrot.slane %v52, %v400
    %v402 = vlaneseq
    %v403 = vshrl.u32 %v402, 7
    %v404 = vsub.s32 5, %v403
    %v405 = vrot.slane %v53, %v404
    %v406 = vmul.f32 %v394, %v401
    %v407 = vmul.f32 %v396, %v405
    %v408 = vmul.f32 %v395, %v401
    %v409 = vmul.f32 %v397, %v405
    %410 = vset.pattern.permute.xlu0 6
    %411 = vperm.xlu0 %410, %v46
    %v412 = vpop.permute.xlu0 %411
    %414 = vset.pattern.permute.xlu0 6
    %415 = vperm.xlu0 %414, %v47
    %v416 = vpop.permute.xlu0 %415
    %v418 = vmul.f32 %v412, %v406
    %v419 = vmul.f32 %v412, %v407
    %v420 = vmul.f32 %v416, %v408
    %v421 = vmul.f32 %v416, %v409
    %v422 = vadd.f32 %v381, %v418
    %v423 = vadd.f32 %v382, %v419
    %v424 = vadd.f32 %v383, %v420
    %v425 = vadd.f32 %v384, %v421
    %426 = vrot.lane.b32.xlu0 %v160, 112
    %v427 = vpop.permute.xlu0 %426
    %428 = vrot.lane.b32.xlu0 %v162, 112
    %v429 = vpop.permute.xlu0 %428
    %430 = vrot.lane.b32.xlu0 %v161, 112
    %v431 = vpop.permute.xlu0 %430
    %432 = vrot.lane.b32.xlu0 %v163, 112
    %v433 = vpop.permute.xlu0 %432
    %vm434 = vcmp.lt.s32.totalorder %v187, 112
    %v435 = vsel %vm434, %v427, %v431
    %v436 = vsel %vm434, %v429, %v433
    %v437 = vsel %vm434, %v431, %v427
    %v438 = vsel %vm434, %v433, %v429
    %v439 = vlaneseq
    %v440 = vshrl.u32 %v439, 7
    %v441 = vsub.s32 6, %v440
    %v442 = vrot.slane %v52, %v441
    %v443 = vlaneseq
    %v444 = vshrl.u32 %v443, 7
    %v445 = vsub.s32 6, %v444
    %v446 = vrot.slane %v53, %v445
    %v447 = vmul.f32 %v435, %v442
    %v448 = vmul.f32 %v437, %v446
    %v449 = vmul.f32 %v436, %v442
    %v450 = vmul.f32 %v438, %v446
    %451 = vset.pattern.permute.xlu0 7
    %452 = vperm.xlu0 %451, %v46
    %v453 = vpop.permute.xlu0 %452
    %455 = vset.pattern.permute.xlu0 7
    %456 = vperm.xlu0 %455, %v47
    %v457 = vpop.permute.xlu0 %456
    %v459 = vmul.f32 %v453, %v447
    %v460 = vmul.f32 %v453, %v448
    %v461 = vmul.f32 %v457, %v449
    %v462 = vmul.f32 %v457, %v450
    %v463 = vadd.f32 %v422, %v459
    %v464 = vadd.f32 %v423, %v460
    %v465 = vadd.f32 %v424, %v461
    %v466 = vadd.f32 %v425, %v462
    %467 = vrot.lane.b32.xlu0 %v160, 111
    %v468 = vpop.permute.xlu0 %467
    %469 = vrot.lane.b32.xlu0 %v162, 111
    %v470 = vpop.permute.xlu0 %469
    %471 = vrot.lane.b32.xlu0 %v161, 111
    %v472 = vpop.permute.xlu0 %471
    %473 = vrot.lane.b32.xlu0 %v163, 111
    %v474 = vpop.permute.xlu0 %473
    %vm475 = vcmp.lt.s32.totalorder %v187, 111
    %v476 = vsel %vm475, %v468, %v472
    %v477 = vsel %vm475, %v470, %v474
    %v478 = vsel %vm475, %v472, %v468
    %v479 = vsel %vm475, %v474, %v470
    %v480 = vlaneseq
    %v481 = vshrl.u32 %v480, 7
    %v482 = vsub.s32 7, %v481
    %v483 = vrot.slane %v52, %v482
    %v484 = vlaneseq
    %v485 = vshrl.u32 %v484, 7
    %v486 = vsub.s32 7, %v485
    %v487 = vrot.slane %v53, %v486
    %v488 = vmul.f32 %v476, %v483
    %v489 = vmul.f32 %v478, %v487
    %v490 = vmul.f32 %v477, %v483
    %v491 = vmul.f32 %v479, %v487
    %492 = vset.pattern.permute.xlu0 8
    %493 = vperm.xlu0 %492, %v46
    %v494 = vpop.permute.xlu0 %493
    %496 = vset.pattern.permute.xlu0 8
    %497 = vperm.xlu0 %496, %v47
    %v498 = vpop.permute.xlu0 %497
    %v500 = vmul.f32 %v494, %v488
    %v501 = vmul.f32 %v494, %v489
    %v502 = vmul.f32 %v498, %v490
    %v503 = vmul.f32 %v498, %v491
    %v504 = vadd.f32 %v463, %v500
    %v505 = vadd.f32 %v464, %v501
    %v506 = vadd.f32 %v465, %v502
    %v507 = vadd.f32 %v466, %v503
    %509 = vset.pattern.permute.xlu0 0
    %510 = vperm.xlu0 %509, %v48
    %v511 = vpop.permute.xlu0 %510
    %514 = vset.pattern.permute.xlu0 0
    %515 = vperm.xlu0 %514, %v49
    %v516 = vpop.permute.xlu0 %515
    %v518 = vadd.f32 %v504, %v511
    %v519 = vadd.f32 %v505, %v511
    %v520 = vadd.f32 %v506, %v516
    %v521 = vadd.f32 %v507, %v516
    %v522 = vmax.f32 %v518, 0.0
    %v523 = vmax.f32 %v519, 0.0
    %v524 = vmax.f32 %v520, 0.0
    %v525 = vmax.f32 %v521, 0.0
    %v526 = vmin.f32 %v522, 6.0
    %v527 = vmin.f32 %v523, 6.0
    %v528 = vmin.f32 %v524, 6.0
    %v529 = vmin.f32 %v525, 6.0
    %v530 = vadd.f32 %v526, %v527
    %531 = vadd.xlane.f32.xlu0 %v530
    %v532 = vpop.xlane.xlu0 %531
    %v533 = vadd.f32 %v528, %v529
    %534 = vadd.xlane.f32.xlu0 %v533
    %v535 = vpop.xlane.xlu0 %534
    %v536 = vmul.f32 %v532, 0.00390625
    %v537 = vmul.f32 %v535, 0.00390625
    %v538 = vld [vmem:[%s6] sm:$0xff]
    %v539 = vld [vmem:[%s6 + $0x8] sm:$0xff]
    %v540 = vmul.f32 %v538, %v536
    %v541 = vmul.f32 %v539, %v537
    %v542 = vsel %vm67, %v540, 0.0
    %v543 = vsel %vm67, %v541, 0.0
    %v544 = vadd.f32 %v542, %v543
    %v545 = vrot.slane %v544, 4
    %v546 = vadd.f32 %v544, %v545
    %v547 = vrot.slane %v546, 2
    %v548 = vadd.f32 %v546, %v547
    %v549 = vrot.slane %v548, 1
    %v550 = vadd.f32 %v548, %v549
    %v551 = vld [vmem:[%s7] sm:$0x1]
    %v552 = vadd.f32 %v550, %v551
    %v553 = vmax.f32 %v552, 0.0
    %v554 = vld [vmem:[%s8] sm:$0xff]
    %v555 = vld [vmem:[%s8 + $0x8] sm:$0xff]
    %v556 = vlaneseq
    %v557 = vshrl.u32 %v556, 7
    %v558 = vsub.s32 0, %v557
    %v559 = vrot.slane %v553, %v558
    %v560 = vmul.f32 %v554, %v559
    %v561 = vmul.f32 %v555, %v559
    %v562 = vsel %vm67, %v560, 0.0
    %563 = vadd.xlane.f32.xlu0 %v562
    %v564 = vpop.xlane.xlu0 %563
    %v565 = vsel %vm67, %v561, 0.0
    %566 = vadd.xlane.f32.xlu0 %v565
    %v567 = vpop.xlane.xlu0 %566
    %v568 = vld [vmem:[%s9] sm:$0xff]
    %v569 = vld [vmem:[%s9 + $0x8] sm:$0xff]
    %v570 = vadd.f32 %v564, %v568
    %v571 = vadd.f32 %v567, %v569
    %v572 = vsub.f32 0.0, %v570
    %v573 = vsub.f32 0.0, %v571
    %v574 = vmul.f32 %v572, 1.442695
    %v575 = vpow.pop %v574
    %v576 = vmul.f32 %v573, 1.442695
    %v577 = vpow.pop %v576
    %v578 = vadd.f32 %v575, 1.0
    %v579 = vadd.f32 %v577, 1.0
    %v580 = vrcp.pop %v578
    %v581 = vrcp.pop %v579
    %583 = vset.pattern.permute.xlu0 0
    %584 = vperm.xlu0 %583, %v580
    %v585 = vpop.permute.xlu0 %584
    %588 = vset.pattern.permute.xlu0 0
    %589 = vperm.xlu0 %588, %v581
    %v590 = vpop.permute.xlu0 %589
    %v592 = vmul.f32 %v526, %v585
    %v593 = vmul.f32 %v527, %v585
    %v594 = vmul.f32 %v528, %v590
    %v595 = vmul.f32 %v529, %v590
    %597 = vset.pattern.permute.xlu0 0
    %598 = vperm.xlu0 %597, %v51
    %v599 = vpop.permute.xlu0 %598
    %vm601 = vcmask 130048
    %v603 = vsel %vm601, %v50, 0
    %605 = vmatprep.subr.mxu0 %v593
    %606 = vmatpush1.msra.mxu0 %v592
    %607 = vmatprep.subr.mxu0 %v595
    %608 = vmatpush1.msra.mxu0 %v594
    %609 = vmatprep.subr.mxu0 0.0
    %610 = vmatpush1.msra.mxu0 0.0
    %611 = vmatprep.subr.mxu0 0.0
    %612 = vmatpush1.msra.mxu0 0.0
    %613 = vmatprep.subr.mxu0 0.0
    %614 = vmatpush1.msra.mxu0 0.0
    %615 = vmatprep.subr.mxu0 0.0
    %616 = vmatpush1.msra.mxu0 0.0
    %617 = vmatprep.subr.mxu0 0.0
    %618 = vmatpush1.msra.mxu0 0.0
    %619 = vmatprep.subr.mxu0 0.0
    %620 = vmatpush1.msra.mxu0 0.0
    %621 = vmatprep.subr.mxu0 0.0
    %622 = vmatpush1.msra.mxu0 0.0
    %623 = vmatprep.subr.mxu0 0.0
    %624 = vmatpush1.msra.mxu0 0.0
    %625 = vmatprep.subr.mxu0 0.0
    %626 = vmatpush1.msra.mxu0 0.0
    %627 = vmatprep.subr.mxu0 0.0
    %628 = vmatpush1.msra.mxu0 0.0
    %629 = vmatprep.subr.mxu0 0.0
    %630 = vmatpush1.msra.mxu0 0.0
    %631 = vmatprep.subr.mxu0 0.0
    %632 = vmatpush1.msra.mxu0 0.0
    %633 = vmatprep.subr.mxu0 0.0
    %634 = vmatpush1.msra.mxu0 0.0
    %635 = vmatprep.subr.mxu0 0.0
    %636 = vmatpush1.msra.mxu0 0.0
    %637 = vmatprep.subr.mxu0 0.0
    %638 = vmatpush1.msra.mxu0 0.0
    %639 = vmatprep.subr.mxu0 0.0
    %640 = vmatpush1.msra.mxu0 0.0
    %641 = vmatprep.subr.mxu0 0.0
    %642 = vmatpush1.msra.mxu0 0.0
    %643 = vmatprep.subr.mxu0 0.0
    %644 = vmatpush1.msra.mxu0 0.0
    %645 = vmatprep.subr.mxu0 0.0
    %646 = vmatpush1.msra.mxu0 0.0
    %647 = vmatprep.subr.mxu0 0.0
    %648 = vmatpush1.msra.mxu0 0.0
    %649 = vmatprep.subr.mxu0 0.0
    %650 = vmatpush1.msra.mxu0 0.0
    %651 = vmatprep.subr.mxu0 0.0
    %652 = vmatpush1.msra.mxu0 0.0
    %653 = vmatprep.subr.mxu0 0.0
    %654 = vmatpush1.msra.mxu0 0.0
    %655 = vmatprep.subr.mxu0 0.0
    %656 = vmatpush1.msra.mxu0 0.0
    %657 = vmatprep.subr.mxu0 0.0
    %658 = vmatpush1.msra.mxu0 0.0
    %659 = vmatprep.subr.mxu0 0.0
    %660 = vmatpush1.msra.mxu0 0.0
    %661 = vmatprep.subr.mxu0 0.0
    %662 = vmatpush1.msra.mxu0 0.0
    %663 = vmatprep.subr.mxu0 0.0
    %664 = vmatpush1.msra.mxu0 0.0
    %665 = vmatprep.subr.mxu0 0.0
    %666 = vmatpush1.msra.mxu0 0.0
    %667 = vmatprep.subr.mxu0 0.0
    %668 = vmatpush1.msra.mxu0 0.0
    %669 = vmatprep.mubr.f32.mxu0 0.0
    %670 = vmatmul.mubr.f32.gmra.mrb[0].mxu0 %v603
    %v671 = vpop.f32.mrb[0].mxu0
    %v672 = vadd.f32 %v599, %v671
    %v673 = vpop.f32.mrb[0].mxu0
    %v674 = vadd.f32 %v599, %v673
    %675 = vdwg.mxu0
    %v678 = vcombine.low %v672, %v674
    %v680 = vadd.f32 %v54, %v678
    %681 = vst [vmem:[#allocation2] sm:$0xff] %v680
    %s682 = scalar_lea.vmem %s0, 8
    %v683 = vld [vmem:[%s682] sm:$0xff]
    %v685 = vcombine.high %v683, %v683
    %v686 = vsel %vm74, %v683, 0
    %v688 = vsel %vm74, %v685, 0
    %690 = vmatprep.subr.mxu0 %v688
    %691 = vmatpush1.msra.mxu0 %v686
    %692 = vmatprep.subr.mxu0 0.0
    %693 = vmatpush1.msra.mxu0 0.0
    %694 = vmatprep.subr.mxu0 0.0
    %695 = vmatpush1.msra.mxu0 0.0
    %696 = vmatprep.subr.mxu0 0.0
    %697 = vmatpush1.msra.mxu0 0.0
    %698 = vmatprep.subr.mxu0 0.0
    %699 = vmatpush1.msra.mxu0 0.0
    %700 = vmatprep.subr.mxu0 0.0
    %701 = vmatpush1.msra.mxu0 0.0
    %702 = vmatprep.subr.mxu0 0.0
    %703 = vmatpush1.msra.mxu0 0.0
    %704 = vmatprep.subr.mxu0 0.0
    %705 = vmatpush1.msra.mxu0 0.0
    %706 = vmatprep.subr.mxu0 0.0
    %707 = vmatpush1.msra.mxu0 0.0
    %708 = vmatprep.subr.mxu0 0.0
    %709 = vmatpush1.msra.mxu0 0.0
    %710 = vmatprep.subr.mxu0 0.0
    %711 = vmatpush1.msra.mxu0 0.0
    %712 = vmatprep.subr.mxu0 0.0
    %713 = vmatpush1.msra.mxu0 0.0
    %714 = vmatprep.subr.mxu0 0.0
    %715 = vmatpush1.msra.mxu0 0.0
    %716 = vmatprep.subr.mxu0 0.0
    %717 = vmatpush1.msra.mxu0 0.0
    %718 = vmatprep.subr.mxu0 0.0
    %719 = vmatpush1.msra.mxu0 0.0
    %720 = vmatprep.subr.mxu0 0.0
    %721 = vmatpush1.msra.mxu0 0.0
    %722 = vmatprep.subr.mxu0 0.0
    %723 = vmatpush1.msra.mxu0 0.0
    %724 = vmatprep.subr.mxu0 0.0
    %725 = vmatpush1.msra.mxu0 0.0
    %726 = vmatprep.subr.mxu0 0.0
    %727 = vmatpush1.msra.mxu0 0.0
    %728 = vmatprep.subr.mxu0 0.0
    %729 = vmatpush1.msra.mxu0 0.0
    %730 = vmatprep.subr.mxu0 0.0
    %731 = vmatpush1.msra.mxu0 0.0
    %732 = vmatprep.subr.mxu0 0.0
    %733 = vmatpush1.msra.mxu0 0.0
    %734 = vmatprep.subr.mxu0 0.0
    %735 = vmatpush1.msra.mxu0 0.0
    %736 = vmatprep.subr.mxu0 0.0
    %737 = vmatpush1.msra.mxu0 0.0
    %738 = vmatprep.subr.mxu0 0.0
    %739 = vmatpush1.msra.mxu0 0.0
    %740 = vmatprep.subr.mxu0 0.0
    %741 = vmatpush1.msra.mxu0 0.0
    %742 = vmatprep.subr.mxu0 0.0
    %743 = vmatpush1.msra.mxu0 0.0
    %744 = vmatprep.subr.mxu0 0.0
    %745 = vmatpush1.msra.mxu0 0.0
    %746 = vmatprep.subr.mxu0 0.0
    %747 = vmatpush1.msra.mxu0 0.0
    %748 = vmatprep.subr.mxu0 0.0
    %749 = vmatpush1.msra.mxu0 0.0
    %750 = vmatprep.subr.mxu0 0.0
    %751 = vmatpush1.msra.mxu0 0.0
    %752 = vmatprep.subr.mxu0 0.0
    %753 = vmatpush1.msra.mxu0 0.0
    %754 = vmatprep.mubr.f32.mxu0 0.0
    %755 = vmatmul.mubr.f32.gmra.mrb[0].mxu0 %v69
    %v756 = vpop.f32.mrb[0].mxu0
    %v757 = vadd.f32 %v58, %v756
    %v758 = vpop.f32.mrb[0].mxu0
    %v759 = vadd.f32 %v58, %v758
    %760 = vmatprep.mubr.f32.mxu0 0.0
    %761 = vmatmul.mubr.f32.gmra.mrb[0].mxu0 %v72
    %v762 = vpop.f32.mrb[0].mxu0
    %v763 = vadd.f32 %v63, %v762
    %v764 = vpop.f32.mrb[0].mxu0
    %v765 = vadd.f32 %v63, %v764
    %766 = vdwg.mxu0
    %v767 = vmax.f32 %v757, 0.0
    %v768 = vmax.f32 %v759, 0.0
    %v769 = vmax.f32 %v763, 0.0
    %v770 = vmax.f32 %v765, 0.0
    %v771 = vmin.f32 %v767, 6.0
    %v772 = vmin.f32 %v768, 6.0
    %v773 = vmin.f32 %v769, 6.0
    %v774 = vmin.f32 %v770, 6.0
    %v775 = vmul.f32 %v167, %v771
    %v776 = vmul.f32 %v167, %v772
    %v777 = vmul.f32 %v172, %v773
    %v778 = vmul.f32 %v172, %v774
    %779 = vrot.lane.b32.xlu0 %v771, 17
    %v780 = vpop.permute.xlu0 %779
    %781 = vrot.lane.b32.xlu0 %v773, 17
    %v782 = vpop.permute.xlu0 %781
    %783 = vrot.lane.b32.xlu0 %v772, 17
    %v784 = vpop.permute.xlu0 %783
    %785 = vrot.lane.b32.xlu0 %v774, 17
    %v786 = vpop.permute.xlu0 %785
    %v787 = vsel %vm188, %v780, %v784
    %v788 = vsel %vm188, %v782, %v786
    %v789 = vsel %vm188, %v784, %v780
    %v790 = vsel %vm188, %v786, %v782
    %v791 = vmul.f32 %v789, %v196
    %v792 = vmul.f32 %v787, %v200
    %v793 = vmul.f32 %v790, %v196
    %v794 = vmul.f32 %v788, %v200
    %v795 = vmul.f32 %v207, %v791
    %v796 = vmul.f32 %v207, %v792
    %v797 = vmul.f32 %v211, %v793
    %v798 = vmul.f32 %v211, %v794
    %v799 = vadd.f32 %v775, %v795
    %v800 = vadd.f32 %v776, %v796
    %v801 = vadd.f32 %v777, %v797
    %v802 = vadd.f32 %v778, %v798
    %803 = vrot.lane.b32.xlu0 %v771, 16
    %v804 = vpop.permute.xlu0 %803
    %805 = vrot.lane.b32.xlu0 %v773, 16
    %v806 = vpop.permute.xlu0 %805
    %807 = vrot.lane.b32.xlu0 %v772, 16
    %v808 = vpop.permute.xlu0 %807
    %809 = vrot.lane.b32.xlu0 %v774, 16
    %v810 = vpop.permute.xlu0 %809
    %v811 = vsel %vm229, %v804, %v808
    %v812 = vsel %vm229, %v806, %v810
    %v813 = vsel %vm229, %v808, %v804
    %v814 = vsel %vm229, %v810, %v806
    %v815 = vmul.f32 %v813, %v237
    %v816 = vmul.f32 %v811, %v241
    %v817 = vmul.f32 %v814, %v237
    %v818 = vmul.f32 %v812, %v241
    %v819 = vmul.f32 %v248, %v815
    %v820 = vmul.f32 %v248, %v816
    %v821 = vmul.f32 %v252, %v817
    %v822 = vmul.f32 %v252, %v818
    %v823 = vadd.f32 %v799, %v819
    %v824 = vadd.f32 %v800, %v820
    %v825 = vadd.f32 %v801, %v821
    %v826 = vadd.f32 %v802, %v822
    %827 = vrot.lane.b32.xlu0 %v771, 15
    %v828 = vpop.permute.xlu0 %827
    %829 = vrot.lane.b32.xlu0 %v773, 15
    %v830 = vpop.permute.xlu0 %829
    %831 = vrot.lane.b32.xlu0 %v772, 15
    %v832 = vpop.permute.xlu0 %831
    %833 = vrot.lane.b32.xlu0 %v774, 15
    %v834 = vpop.permute.xlu0 %833
    %v835 = vsel %vm270, %v828, %v832
    %v836 = vsel %vm270, %v830, %v834
    %v837 = vsel %vm270, %v832, %v828
    %v838 = vsel %vm270, %v834, %v830
    %v839 = vmul.f32 %v837, %v278
    %v840 = vmul.f32 %v835, %v282
    %v841 = vmul.f32 %v838, %v278
    %v842 = vmul.f32 %v836, %v282
    %v843 = vmul.f32 %v289, %v839
    %v844 = vmul.f32 %v289, %v840
    %v845 = vmul.f32 %v293, %v841
    %v846 = vmul.f32 %v293, %v842
    %v847 = vadd.f32 %v823, %v843
    %v848 = vadd.f32 %v824, %v844
    %v849 = vadd.f32 %v825, %v845
    %v850 = vadd.f32 %v826, %v846
    %851 = vrot.lane.b32.xlu0 %v771, 1
    %v852 = vpop.permute.xlu0 %851
    %853 = vrot.lane.b32.xlu0 %v773, 1
    %v854 = vpop.permute.xlu0 %853
    %855 = vrot.lane.b32.xlu0 %v772, 1
    %v856 = vpop.permute.xlu0 %855
    %857 = vrot.lane.b32.xlu0 %v774, 1
    %v858 = vpop.permute.xlu0 %857
    %v859 = vsel %vm311, %v852, %v856
    %v860 = vsel %vm311, %v854, %v858
    %v861 = vsel %vm311, %v856, %v852
    %v862 = vsel %vm311, %v858, %v854
    %v863 = vmul.f32 %v861, %v319
    %v864 = vmul.f32 %v859, %v323
    %v865 = vmul.f32 %v862, %v319
    %v866 = vmul.f32 %v860, %v323
    %v867 = vmul.f32 %v330, %v863
    %v868 = vmul.f32 %v330, %v864
    %v869 = vmul.f32 %v334, %v865
    %v870 = vmul.f32 %v334, %v866
    %v871 = vadd.f32 %v847, %v867
    %v872 = vadd.f32 %v848, %v868
    %v873 = vadd.f32 %v849, %v869
    %v874 = vadd.f32 %v850, %v870
    %875 = vrot.lane.b32.xlu0 %v771, 127
    %v876 = vpop.permute.xlu0 %875
    %877 = vrot.lane.b32.xlu0 %v773, 127
    %v878 = vpop.permute.xlu0 %877
    %879 = vrot.lane.b32.xlu0 %v772, 127
    %v880 = vpop.permute.xlu0 %879
    %881 = vrot.lane.b32.xlu0 %v774, 127
    %v882 = vpop.permute.xlu0 %881
    %v883 = vsel %vm352, %v876, %v880
    %v884 = vsel %vm352, %v878, %v882
    %v885 = vsel %vm352, %v880, %v876
    %v886 = vsel %vm352, %v882, %v878
    %v887 = vmul.f32 %v883, %v360
    %v888 = vmul.f32 %v885, %v364
    %v889 = vmul.f32 %v884, %v360
    %v890 = vmul.f32 %v886, %v364
    %v891 = vmul.f32 %v371, %v887
    %v892 = vmul.f32 %v371, %v888
    %v893 = vmul.f32 %v375, %v889
    %v894 = vmul.f32 %v375, %v890
    %v895 = vadd.f32 %v871, %v891
    %v896 = vadd.f32 %v872, %v892
    %v897 = vadd.f32 %v873, %v893
    %v898 = vadd.f32 %v874, %v894
    %899 = vrot.lane.b32.xlu0 %v771, 113
    %v900 = vpop.permute.xlu0 %899
    %901 = vrot.lane.b32.xlu0 %v773, 113
    %v902 = vpop.permute.xlu0 %901
    %903 = vrot.lane.b32.xlu0 %v772, 113
    %v904 = vpop.permute.xlu0 %903
    %905 = vrot.lane.b32.xlu0 %v774, 113
    %v906 = vpop.permute.xlu0 %905
    %v907 = vsel %vm393, %v900, %v904
    %v908 = vsel %vm393, %v902, %v906
    %v909 = vsel %vm393, %v904, %v900
    %v910 = vsel %vm393, %v906, %v902
    %v911 = vmul.f32 %v907, %v401
    %v912 = vmul.f32 %v909, %v405
    %v913 = vmul.f32 %v908, %v401
    %v914 = vmul.f32 %v910, %v405
    %v915 = vmul.f32 %v412, %v911
    %v916 = vmul.f32 %v412, %v912
    %v917 = vmul.f32 %v416, %v913
    %v918 = vmul.f32 %v416, %v914
    %v919 = vadd.f32 %v895, %v915
    %v920 = vadd.f32 %v896, %v916
    %v921 = vadd.f32 %v897, %v917
    %v922 = vadd.f32 %v898, %v918
    %923 = vrot.lane.b32.xlu0 %v771, 112
    %v924 = vpop.permute.xlu0 %923
    %925 = vrot.lane.b32.xlu0 %v773, 112
    %v926 = vpop.permute.xlu0 %925
    %927 = vrot.lane.b32.xlu0 %v772, 112
    %v928 = vpop.permute.xlu0 %927
    %929 = vrot.lane.b32.xlu0 %v774, 112
    %v930 = vpop.permute.xlu0 %929
    %v931 = vsel %vm434, %v924, %v928
    %v932 = vsel %vm434, %v926, %v930
    %v933 = vsel %vm434, %v928, %v924
    %v934 = vsel %vm434, %v930, %v926
    %v935 = vmul.f32 %v931, %v442
    %v936 = vmul.f32 %v933, %v446
    %v937 = vmul.f32 %v932, %v442
    %v938 = vmul.f32 %v934, %v446
    %v939 = vmul.f32 %v453, %v935
    %v940 = vmul.f32 %v453, %v936
    %v941 = vmul.f32 %v457, %v937
    %v942 = vmul.f32 %v457, %v938
    %v943 = vadd.f32 %v919, %v939
    %v944 = vadd.f32 %v920, %v940
    %v945 = vadd.f32 %v921, %v941
    %v946 = vadd.f32 %v922, %v942
    %947 = vrot.lane.b32.xlu0 %v771, 111
    %v948 = vpop.permute.xlu0 %947
    %949 = vrot.lane.b32.xlu0 %v773, 111
    %v950 = vpop.permute.xlu0 %949
    %951 = vrot.lane.b32.xlu0 %v772, 111
    %v952 = vpop.permute.xlu0 %951
    %953 = vrot.lane.b32.xlu0 %v774, 111
    %v954 = vpop.permute.xlu0 %953
    %v955 = vsel %vm475, %v948, %v952
    %v956 = vsel %vm475, %v950, %v954
    %v957 = vsel %vm475, %v952, %v948
    %v958 = vsel %vm475, %v954, %v950
    %v959 = vmul.f32 %v955, %v483
    %v960 = vmul.f32 %v957, %v487
    %v961 = vmul.f32 %v956, %v483
    %v962 = vmul.f32 %v958, %v487
    %v963 = vmul.f32 %v494, %v959
    %v964 = vmul.f32 %v494, %v960
    %v965 = vmul.f32 %v498, %v961
    %v966 = vmul.f32 %v498, %v962
    %v967 = vadd.f32 %v943, %v963
    %v968 = vadd.f32 %v944, %v964
    %v969 = vadd.f32 %v945, %v965
    %v970 = vadd.f32 %v946, %v966
    %v971 = vadd.f32 %v967, %v511
    %v972 = vadd.f32 %v968, %v511
    %v973 = vadd.f32 %v969, %v516
    %v974 = vadd.f32 %v970, %v516
    %v975 = vmax.f32 %v971, 0.0
    %v976 = vmax.f32 %v972, 0.0
    %v977 = vmax.f32 %v973, 0.0
    %v978 = vmax.f32 %v974, 0.0
    %v979 = vmin.f32 %v975, 6.0
    %v980 = vmin.f32 %v976, 6.0
    %v981 = vmin.f32 %v977, 6.0
    %v982 = vmin.f32 %v978, 6.0
    %v983 = vadd.f32 %v979, %v980
    %984 = vadd.xlane.f32.xlu0 %v983
    %v985 = vpop.xlane.xlu0 %984
    %v986 = vadd.f32 %v981, %v982
    %987 = vadd.xlane.f32.xlu0 %v986
    %v988 = vpop.xlane.xlu0 %987
    %v989 = vmul.f32 %v985, 0.00390625
    %v990 = vmul.f32 %v988, 0.00390625
    %v991 = vld [vmem:[%s6] sm:$0xff]
    %v992 = vld [vmem:[%s6 + $0x8] sm:$0xff]
    %v993 = vmul.f32 %v991, %v989
    %v994 = vmul.f32 %v992, %v990
    %v995 = vsel %vm67, %v993, 0.0
    %v996 = vsel %vm67, %v994, 0.0
    %v997 = vadd.f32 %v995, %v996
    %v998 = vrot.slane %v997, 4
    %v999 = vadd.f32 %v997, %v998
    %v1000 = vrot.slane %v999, 2
    %v1001 = vadd.f32 %v999, %v1000
    %v1002 = vrot.slane %v1001, 1
    %v1003 = vadd.f32 %v1001, %v1002
    %v1004 = vld [vmem:[%s7] sm:$0x1]
    %v1005 = vadd.f32 %v1003, %v1004
    %v1006 = vmax.f32 %v1005, 0.0
    %v1007 = vld [vmem:[%s8] sm:$0xff]
    %v1008 = vld [vmem:[%s8 + $0x8] sm:$0xff]
    %v1009 = vlaneseq
    %v1010 = vshrl.u32 %v1009, 7
    %v1011 = vsub.s32 0, %v1010
    %v1012 = vrot.slane %v1006, %v1011
    %v1013 = vmul.f32 %v1007, %v1012
    %v1014 = vmul.f32 %v1008, %v1012
    %v1015 = vsel %vm67, %v1013, 0.0
    %1016 = vadd.xlane.f32.xlu0 %v1015
    %v1017 = vpop.xlane.xlu0 %1016
    %v1018 = vsel %vm67, %v1014, 0.0
    %1019 = vadd.xlane.f32.xlu0 %v1018
    %v1020 = vpop.xlane.xlu0 %1019
    %v1021 = vld [vmem:[%s9] sm:$0xff]
    %v1022 = vld [vmem:[%s9 + $0x8] sm:$0xff]
    %v1023 = vadd.f32 %v1017, %v1021
    %v1024 = vadd.f32 %v1020, %v1022
    %v1025 = vsub.f32 0.0, %v1023
    %v1026 = vsub.f32 0.0, %v1024
    %v1027 = vmul.f32 %v1025, 1.442695
    %v1028 = vpow.pop %v1027
    %v1029 = vmul.f32 %v1026, 1.442695
    %v1030 = vpow.pop %v1029
    %v1031 = vadd.f32 %v1028, 1.0
    %v1032 = vadd.f32 %v1030, 1.0
    %v1033 = vrcp.pop %v1031
    %v1034 = vrcp.pop %v1032
    %1036 = vset.pattern.permute.xlu0 0
    %1037 = vperm.xlu0 %1036, %v1033
    %v1038 = vpop.permute.xlu0 %1037
    %1041 = vset.pattern.permute.xlu0 0
    %1042 = vperm.xlu0 %1041, %v1034
    %v1043 = vpop.permute.xlu0 %1042
    %v1045 = vmul.f32 %v979, %v1038
    %v1046 = vmul.f32 %v980, %v1038
    %v1047 = vmul.f32 %v981, %v1043
    %v1048 = vmul.f32 %v982, %v1043
    %1049 = vmatprep.subr.mxu0 %v1046
    %1050 = vmatpush1.msra.mxu0 %v1045
    %1051 = vmatprep.subr.mxu0 %v1048
    %1052 = vmatpush1.msra.mxu0 %v1047
    %1053 = vmatprep.subr.mxu0 0.0
    %1054 = vmatpush1.msra.mxu0 0.0
    %1055 = vmatprep.subr.mxu0 0.0
    %1056 = vmatpush1.msra.mxu0 0.0
    %1057 = vmatprep.subr.mxu0 0.0
    %1058 = vmatpush1.msra.mxu0 0.0
    %1059 = vmatprep.subr.mxu0 0.0
    %1060 = vmatpush1.msra.mxu0 0.0
    %1061 = vmatprep.subr.mxu0 0.0
    %1062 = vmatpush1.msra.mxu0 0.0
    %1063 = vmatprep.subr.mxu0 0.0
    %1064 = vmatpush1.msra.mxu0 0.0
    %1065 = vmatprep.subr.mxu0 0.0
    %1066 = vmatpush1.msra.mxu0 0.0
    %1067 = vmatprep.subr.mxu0 0.0
    %1068 = vmatpush1.msra.mxu0 0.0
    %1069 = vmatprep.subr.mxu0 0.0
    %1070 = vmatpush1.msra.mxu0 0.0
    %1071 = vmatprep.subr.mxu0 0.0
    %1072 = vmatpush1.msra.mxu0 0.0
    %1073 = vmatprep.subr.mxu0 0.0
    %1074 = vmatpush1.msra.mxu0 0.0
    %1075 = vmatprep.subr.mxu0 0.0
    %1076 = vmatpush1.msra.mxu0 0.0
    %1077 = vmatprep.subr.mxu0 0.0
    %1078 = vmatpush1.msra.mxu0 0.0
    %1079 = vmatprep.subr.mxu0 0.0
    %1080 = vmatpush1.msra.mxu0 0.0
    %1081 = vmatprep.subr.mxu0 0.0
    %1082 = vmatpush1.msra.mxu0 0.0
    %1083 = vmatprep.subr.mxu0 0.0
    %1084 = vmatpush1.msra.mxu0 0.0
    %1085 = vmatprep.subr.mxu0 0.0
    %1086 = vmatpush1.msra.mxu0 0.0
    %1087 = vmatprep.subr.mxu0 0.0
    %1088 = vmatpush1.msra.mxu0 0.0
    %1089 = vmatprep.subr.mxu0 0.0
    %1090 = vmatpush1.msra.mxu0 0.0
    %1091 = vmatprep.subr.mxu0 0.0
    %1092 = vmatpush1.msra.mxu0 0.0
    %1093 = vmatprep.subr.mxu0 0.0
    %1094 = vmatpush1.msra.mxu0 0.0
    %1095 = vmatprep.subr.mxu0 0.0
    %1096 = vmatpush1.msra.mxu0 0.0
    %1097 = vmatprep.subr.mxu0 0.0
    %1098 = vmatpush1.msra.mxu0 0.0
    %1099 = vmatprep.subr.mxu0 0.0
    %1100 = vmatpush1.msra.mxu0 0.0
    %1101 = vmatprep.subr.mxu0 0.0
    %1102 = vmatpush1.msra.mxu0 0.0
    %1103 = vmatprep.subr.mxu0 0.0
    %1104 = vmatpush1.msra.mxu0 0.0
    %1105 = vmatprep.subr.mxu0 0.0
    %1106 = vmatpush1.msra.mxu0 0.0
    %1107 = vmatprep.subr.mxu0 0.0
    %1108 = vmatpush1.msra.mxu0 0.0
    %1109 = vmatprep.subr.mxu0 0.0
    %1110 = vmatpush1.msra.mxu0 0.0
    %1111 = vmatprep.subr.mxu0 0.0
    %1112 = vmatpush1.msra.mxu0 0.0
    %1113 = vmatprep.mubr.f32.mxu0 0.0
    %1114 = vmatmul.mubr.f32.gmra.mrb[0].mxu0 %v603
    %v1115 = vpop.f32.mrb[0].mxu0
    %v1116 = vadd.f32 %v599, %v1115
    %v1117 = vpop.f32.mrb[0].mxu0
    %v1118 = vadd.f32 %v599, %v1117
    %1119 = vdwg.mxu0
    %v1122 = vcombine.low %v1116, %v1118
    %v1124 = vadd.f32 %v683, %v1122
    %s1125 = scalar_lea.vmem [#allocation2], 8
    %1126 = vst [vmem:[%s1125] sm:$0xff] %v1124
    // Predicated region
    $region50: #{tpu_custom_call.1} parent=1 // pred_check
      _
    $region51: #{tpu_custom_call.1} parent=1 // pred_check_branch
      %1128 = sbr.rel (0) target = $region53
    $region52: #{tpu_custom_call.1} parent=1 // pred_region
      %s1130 = ssub.s32 256, 256
      %1131 = vsyncadd [#allocation3], %s1130
      %s1132 = sshll.u32 [#allocation2], 4
      %s1133 = int_to_ptr.vmem [resolvable:$true] %s1132
      %1138 = dma.vmem_to_hbm [thread:$0]  %s1133, 256, %s12, [#allocation3], 128, 128, 8
    $region53: #{tpu_custom_call.1} parent=1 // pred_fallthru
      _
    // Predicated region
    $region54: #{tpu_custom_call.1} parent=1 // pred_check
      _
    $region55: #{tpu_custom_call.1} parent=1 // pred_check_branch
      %1140 = sbr.rel (0) target = $region57
    $region56: #{tpu_custom_call.1} parent=1 // pred_region
      %1141 = dma.done [#allocation3], 256
    $region57: #{tpu_custom_call.1} parent=1 // pred_fallthru
      _
    %1142 = vsyncpa [#allocation3], 1

</llo_original>
